<compile_context>
chip_gen: v6e
topology: v6e:2x2x1
jax: 0.10.0
libtpu: 0.0.40
codegen_flags: <defaults>
</compile_context>

<pallas_src>
import functools

import jax
import jax.numpy as jnp
from jax.experimental import pallas as pl
from jax.experimental.pallas import tpu as pltpu

LANE = 128


def _pad_axis(x, axis, mult):
    size = x.shape[axis]
    pad = (-size) % mult
    if pad == 0:
        return x
    widths = [(0, 0)] * x.ndim
    widths[axis] = (0, pad)
    return jnp.pad(x, widths)


def _round_up(x, mult):
    return ((x + mult - 1) // mult) * mult


# ----------------------------------------------------------------------------
# Kernel 1: Conv3d(k=3, pad=1) + ReLU + global average pool, im2col fused.
#   Grid (B, D).  Per step (b, d): the three haloed padded planes d, d+1, d+2
#   are resident in VMEM; the conv output for output-plane d is accumulated as
#   27 shifted [Cout, Cin] x [Cin, PPr] matmuls on lane-shifted views, then
#   bias + ReLU, border masking, and a lane reduction into the per-batch
#   pooled accumulator (flushed at the last d).
# ----------------------------------------------------------------------------
def conv_pool_kernel(img0_ref, img1_ref, img2_ref, wk_ref, bc_ref, vmask_ref,
                     out_ref, acc_ref, *, w_dim, ppr, margin, inv_s):
    d = pl.program_id(1)

    @pl.when(d == 0)
    def _init():
        acc_ref[...] = jnp.zeros_like(acc_ref)

    plane_refs = (img0_ref, img1_ref, img2_ref)
    wp2 = w_dim + 2

    conv = None
    for kd in range(3):
        for kh in range(3):
            for kw in range(3):
                off = (kh - 1) * wp2 + (kw - 1)
                start = margin + off                               # static, >= 0
                xk = plane_refs[kd][:, start:start + ppr]          # [Cin, PPr] bf16
                wkk = wk_ref[(kd * 3 + kh) * 3 + kw]               # [Cout, Cin] bf16
                term = jnp.dot(wkk, xk, preferred_element_type=jnp.float32)
                conv = term if conv is None else conv + term       # [Cout, PPr] f32

    hrelu = jnp.maximum(conv + bc_ref[...], 0.0)                   # bias + ReLU (f32)
    hrelu = hrelu * vmask_ref[...]                                 # zero border / pad tail
    acc_ref[...] += jnp.sum(hrelu, axis=1, keepdims=True)          # [Cout, 1]

    @pl.when(d == pl.num_programs(1) - 1)
    def _flush():
        out_ref[...] = jnp.broadcast_to(acc_ref[...] * inv_s, out_ref.shape)


# ----------------------------------------------------------------------------
# Kernel 2: head linear + sigmoid + batch-mean mask + mask-multiply + LR.
#   Tiny: one grid step, everything 128-lane padded.
# ----------------------------------------------------------------------------
def head_mask_lr_kernel(pooled_ref, wh_ref, bh_ref, x_ref, wlr_ref, blr_ref,
                        out_ref):
    pooled = pooled_ref[...].astype(jnp.bfloat16)                  # [B, Cp]
    head = jnp.dot(pooled, wh_ref[...],
                   preferred_element_type=jnp.float32) + bh_ref[...]   # [B, Fp]
    # Pad lanes of `head` are 0 -> sigmoid = 0.5; harmless because the matching
    # pad columns of x and pad rows of wlr are zero.
    mask = jnp.mean(jax.nn.sigmoid(head), axis=0, keepdims=True)       # [1, Fp]
    masked = (x_ref[...] * mask).astype(jnp.bfloat16)                  # [B, Fp]
    out_ref[...] = jnp.dot(masked, wlr_ref[...],
                           preferred_element_type=jnp.float32) + blr_ref[...]


# ----------------------------------------------------------------------------
# Full forward pass
# ----------------------------------------------------------------------------
def cnn_with_global_masking(images_3d, radiomics_feats, params):
    B, Cin, D, H, W = images_3d.shape
    Cout = params["w_conv"].shape[0]
    F = params["wh"].shape[1]
    O = params["wlr"].shape[1]

    pp = (H + 2) * (W + 2)                      # flattened padded-plane positions
    ppr = _round_up(pp, LANE)                   # lane-dense conv intermediate
    margin = W + 3                              # max |lane shift| of the 3x3 (kh,kw) window
    lanes = ppr + 2 * margin

    # ---- image prep: O(image) traffic, no patch-matrix blow-up --------------
    x = images_3d.astype(jnp.bfloat16)
    xpad = jnp.pad(x, ((0, 0), (0, 0), (1, 1), (1, 1), (1, 1)))    # zero pad=1
    xpad = jnp.transpose(xpad, (0, 2, 1, 3, 4))                    # [B, D+2, Cin, H+2, W+2]
    xpad = xpad.reshape(B, D + 2, Cin, pp)                         # flatten plane rows
    xpad = jnp.pad(xpad, ((0, 0), (0, 0), (0, 0),
                          (margin, lanes - margin - pp)))          # lane margins (zeros)

    # conv weight [Cout, Cin, 3,3,3] -> [27, Cout, Cin] with k = kd*9+kh*3+kw
    wk = jnp.transpose(params["w_conv"], (2, 3, 4, 0, 1)).reshape(27, Cout, Cin)
    wk = wk.astype(jnp.bfloat16)
    bc = params["b_conv"].reshape(Cout, 1).astype(jnp.float32)

    # validity mask over flattened padded-plane positions (zeros on the padded
    # border and on the pp->ppr round-up tail)
    p = jnp.arange(ppr)
    hp, wp = p // (W + 2), p % (W + 2)
    vmask = (((hp >= 1) & (hp <= H) & (wp >= 1) & (wp <= W))
             .astype(jnp.float32).reshape(1, ppr))

    kernel1 = functools.partial(conv_pool_kernel, w_dim=W, ppr=ppr,
                                margin=margin, inv_s=1.0 / float(D * H * W))

    cost1 = pl.CostEstimate(
        flops=2 * B * D * 27 * Cout * Cin * ppr,
        transcendentals=0,
        bytes_accessed=(3 * xpad.size * 2 + wk.size * 2
                        + 4 * (bc.size + vmask.size + B * Cout * LANE)),
    )

    pooled3 = pl.pallas_call(
        kernel1,
        out_shape=jax.ShapeDtypeStruct((B, Cout, LANE), jnp.float32),
        grid_spec=pltpu.PrefetchScalarGridSpec(
            num_scalar_prefetch=0,
            grid=(B, D),
            in_specs=[
                # same padded volume passed three times -> kd halo planes
                pl.BlockSpec((None, None, Cin, lanes), lambda b, d: (b, d, 0, 0)),
                pl.BlockSpec((None, None, Cin, lanes), lambda b, d: (b, d + 1, 0, 0)),
                pl.BlockSpec((None, None, Cin, lanes), lambda b, d: (b, d + 2, 0, 0)),
                pl.BlockSpec((27, Cout, Cin), lambda b, d: (0, 0, 0)),   # conv weight (bf16)
                pl.BlockSpec((Cout, 1), lambda b, d: (0, 0)),            # conv bias (f32)
                pl.BlockSpec((1, ppr), lambda b, d: (0, 0)),             # validity mask
            ],
            out_specs=pl.BlockSpec((None, Cout, LANE), lambda b, d: (b, 0, 0)),
            scratch_shapes=[pltpu.VMEM((Cout, 1), jnp.float32)],         # pooled accumulator
        ),
        compiler_params=pltpu.CompilerParams(
            dimension_semantics=("parallel", "arbitrary"),
            vmem_limit_bytes=32 * 1024 * 1024),
        cost_estimate=cost1,
    )(xpad, xpad, xpad, wk, bc, vmask)

    pooled = _pad_axis(pooled3[:, :, 0], 1, LANE)                   # [B, 128] f32

    # ---- head + global mask + logistic regression (one grid step) -----------
    wh = _pad_axis(_pad_axis(params["wh"], 0, LANE), 1, LANE).astype(jnp.bfloat16)
    Cp, Fp = wh.shape
    bh = _pad_axis(params["bh"].reshape(1, -1).astype(jnp.float32), 1, LANE)
    xf = _pad_axis(radiomics_feats.astype(jnp.float32), 1, LANE)
    wlr = _pad_axis(_pad_axis(params["wlr"], 0, LANE), 1, LANE).astype(jnp.bfloat16)
    Op = wlr.shape[1]
    blr = _pad_axis(params["blr"].reshape(1, -1).astype(jnp.float32), 1, LANE)

    out = pl.pallas_call(
        head_mask_lr_kernel,
        out_shape=jax.ShapeDtypeStruct((B, Op), jnp.float32),
        grid_spec=pltpu.PrefetchScalarGridSpec(
            num_scalar_prefetch=0,
            grid=(1,),
            in_specs=[
                pl.BlockSpec((B, Cp), lambda i: (0, 0)),
                pl.BlockSpec((Cp, Fp), lambda i: (0, 0)),
                pl.BlockSpec((1, Fp), lambda i: (0, 0)),
                pl.BlockSpec((B, Fp), lambda i: (0, 0)),
                pl.BlockSpec((Fp, Op), lambda i: (0, 0)),
                pl.BlockSpec((1, Op), lambda i: (0, 0)),
            ],
            out_specs=pl.BlockSpec((B, Op), lambda i: (0, 0)),
        ),
        compiler_params=pltpu.CompilerParams(dimension_semantics=("arbitrary",)),
    )(pooled, wh, bh, xf, wlr, blr)

    return out[:, :O]                                               # [B, 3]


# ----------------------------------------------------------------------------
# Pure-JAX reference (f32) for correctness checking
# ----------------------------------------------------------------------------
def reference_forward(images_3d, radiomics_feats, params):
    x = images_3d.astype(jnp.float32)
    h = jax.lax.conv_general_dilated(
        x, params["w_conv"].astype(jnp.float32),
        window_strides=(1, 1, 1), padding=((1, 1), (1, 1), (1, 1)),
        dimension_numbers=("NCDHW", "OIDHW", "NCDHW"))
    h = jnp.maximum(h + params["b_conv"][None, :, None, None, None], 0.0)
    pooled = jnp.mean(h, axis=(2, 3, 4))                            # [B, Cout]
    head = pooled @ params["wh"] + params["bh"][None]
    mask = jnp.mean(jax.nn.sigmoid(head), axis=0, keepdims=True)    # [1, F]
    feats = radiomics_feats.astype(jnp.float32) * mask
    return feats @ params["wlr"] + params["blr"][None]


def init_params(key, cin=3, cout=8, feature_dim=32, num_classes=3):
    k = jax.random.split(key, 6)
    return {
        "w_conv": jax.random.normal(k[0], (cout, cin, 3, 3, 3), jnp.float32) * 0.1,
        "b_conv": jax.random.normal(k[1], (cout,), jnp.float32) * 0.1,
        "wh": jax.random.normal(k[2], (cout, feature_dim), jnp.float32) * 0.1,
        "bh": jax.random.normal(k[3], (feature_dim,), jnp.float32) * 0.1,
        "wlr": jax.random.normal(k[4], (feature_dim, num_classes), jnp.float32) * 0.1,
        "blr": jax.random.normal(k[5], (num_classes,), jnp.float32) * 0.1,
    }


if __name__ == "__main__":
    B, Cin, D, H, W = 2, 3, 8, 8, 8
    FEATURE_DIM = 32

    key = jax.random.PRNGKey(0)
    k_img, k_rad, k_par = jax.random.split(key, 3)

    images_3d = jax.random.normal(k_img, (B, Cin, D, H, W), jnp.float32)
    radiomics_feats = jax.random.normal(k_rad, (B, FEATURE_DIM), jnp.float32)
    params = init_params(k_par, cin=Cin, cout=8, feature_dim=FEATURE_DIM,
                         num_classes=3)

    logits = jax.block_until_ready(
        cnn_with_global_masking(images_3d, radiomics_feats, params))
    assert logits.shape == (B, 3), logits.shape

    ref = jax.block_until_ready(
        reference_forward(images_3d, radiomics_feats, params))
    err = float(jnp.max(jnp.abs(logits - ref)))
    assert err < 5e-2, f"max abs err vs reference: {err}"

    print("KERNEL_OK")
</pallas_src>

<mosaic_0001>
module attributes {stable_mosaic.version = 11 : i64} {
  func.func @conv_pool_kernel(%arg0: i32, %arg1: i32, %arg2: memref<1x1x3x150xbf16, #tpu.memory_space<vmem>>, %arg3: memref<1x1x3x150xbf16, #tpu.memory_space<vmem>>, %arg4: memref<1x1x3x150xbf16, #tpu.memory_space<vmem>>, %arg5: memref<27x8x3xbf16, #tpu.memory_space<vmem>>, %arg6: memref<8x1xf32, #tpu.memory_space<vmem>>, %arg7: memref<1x128xf32, #tpu.memory_space<vmem>>, %arg8: memref<1x8x128xf32, #tpu.memory_space<vmem>>, %arg9: memref<8x1xf32, #tpu.memory_space<vmem>>) attributes {dimension_semantics = [#tpu.dimension_semantics<parallel>, #tpu.dimension_semantics<arbitrary>], iteration_bounds = array<i64: 2, 8>, scalar_prefetch = 0 : i64, scratch_operands = 1 : i64, tpu.core_type = #tpu.core_type<tc>, window_params = [{transform_indices = @transform_0, window_bounds = array<i64: 1, 1, 3, 150>}, {transform_indices = @transform_1, window_bounds = array<i64: 1, 1, 3, 150>}, {transform_indices = @transform_2, window_bounds = array<i64: 1, 1, 3, 150>}, {pipeline_mode = #tpu.pipeline_mode<synchronous>, transform_indices = @transform_3, window_bounds = array<i64: 27, 8, 3>}, {pipeline_mode = #tpu.pipeline_mode<synchronous>, transform_indices = @transform_4, window_bounds = array<i64: 8, 1>}, {pipeline_mode = #tpu.pipeline_mode<synchronous>, transform_indices = @transform_5, window_bounds = array<i64: 1, 128>}, {transform_indices = @transform_6, window_bounds = array<i64: 1, 8, 128>}]} {
    %c0_i32 = arith.constant 0 : i32
    %0 = arith.cmpi eq, %arg1, %c0_i32 : i32
    %1 = arith.extui %0 : i1 to i32
    %c0_i32_0 = arith.constant 0 : i32
    %2 = arith.cmpi ne, %1, %c0_i32_0 : i32
    scf.if %2 {
      %cst_200 = arith.constant 0.000000e+00 : f32
      %180 = vector.broadcast %cst_200 : f32 to vector<8x1xf32>
      %c0_201 = arith.constant 0 : index
      %c0_202 = arith.constant 0 : index
      %181 = vector.load %arg9[%c0_201, %c0_202] : memref<8x1xf32, #tpu.memory_space<vmem>>, vector<8x1xf32>
      tpu.vector_store %arg9[%c0_201, %c0_202], %180 {strides = array<i32>} : memref<8x1xf32, #tpu.memory_space<vmem>>, vector<8x1xf32>,
    } else {
    }
    %c0 = arith.constant 0 : index
    %c0_1 = arith.constant 0 : index
    %c0_2 = arith.constant 0 : index
    %c0_3 = arith.constant 0 : index
    %3 = vector.load %arg2[%c0, %c0_1, %c0_2, %c0_3] : memref<1x1x3x150xbf16, #tpu.memory_space<vmem>>, vector<1x1x3x128xbf16>
    %4 = vector.shape_cast %3 : vector<1x1x3x128xbf16> to vector<3x128xbf16>
    %c0_4 = arith.constant 0 : index
    %c0_5 = arith.constant 0 : index
    %c0_6 = arith.constant 0 : index
    %5 = vector.load %arg5[%c0_4, %c0_5, %c0_6] : memref<27x8x3xbf16, #tpu.memory_space<vmem>>, vector<1x8x3xbf16>
    %6 = vector.shape_cast %5 : vector<1x8x3xbf16> to vector<8x3xbf16>
    %cst = arith.constant dense<0.000000e+00> : vector<8x128xf32>
    %7 = tpu.matmul %6, %4, %cst {dimension_numbers = #tpu.dot_dimension_numbers<[1], [0], [0], [1], [0, 0, 1, 1], [], []>} : vector<8x3xbf16>, vector<3x128xbf16>, vector<8x128xf32> -> vector<8x128xf32>
    %c0_7 = arith.constant 0 : index
    %c0_8 = arith.constant 0 : index
    %c0_9 = arith.constant 0 : index
    %c1 = arith.constant 1 : index
    %8 = vector.load %arg2[%c0_7, %c0_8, %c0_9, %c1] : memref<1x1x3x150xbf16, #tpu.memory_space<vmem>>, vector<1x1x3x128xbf16>
    %9 = vector.shape_cast %8 : vector<1x1x3x128xbf16> to vector<3x128xbf16>
    %c1_10 = arith.constant 1 : index
    %c0_11 = arith.constant 0 : index
    %c0_12 = arith.constant 0 : index
    %10 = vector.load %arg5[%c1_10, %c0_11, %c0_12] : memref<27x8x3xbf16, #tpu.memory_space<vmem>>, vector<1x8x3xbf16>
    %11 = vector.shape_cast %10 : vector<1x8x3xbf16> to vector<8x3xbf16>
    %cst_13 = arith.constant dense<0.000000e+00> : vector<8x128xf32>
    %12 = tpu.matmul %11, %9, %cst_13 {dimension_numbers = #tpu.dot_dimension_numbers<[1], [0], [0], [1], [0, 0, 1, 1], [], []>} : vector<8x3xbf16>, vector<3x128xbf16>, vector<8x128xf32> -> vector<8x128xf32>
    %13 = arith.addf %7, %12 : vector<8x128xf32>
    %c0_14 = arith.constant 0 : index
    %c0_15 = arith.constant 0 : index
    %c0_16 = arith.constant 0 : index
    %c2 = arith.constant 2 : index
    %14 = vector.load %arg2[%c0_14, %c0_15, %c0_16, %c2] : memref<1x1x3x150xbf16, #tpu.memory_space<vmem>>, vector<1x1x3x128xbf16>
    %15 = vector.shape_cast %14 : vector<1x1x3x128xbf16> to vector<3x128xbf16>
    %c2_17 = arith.constant 2 : index
    %c0_18 = arith.constant 0 : index
    %c0_19 = arith.constant 0 : index
    %16 = vector.load %arg5[%c2_17, %c0_18, %c0_19] : memref<27x8x3xbf16, #tpu.memory_space<vmem>>, vector<1x8x3xbf16>
    %17 = vector.shape_cast %16 : vector<1x8x3xbf16> to vector<8x3xbf16>
    %cst_20 = arith.constant dense<0.000000e+00> : vector<8x128xf32>
    %18 = tpu.matmul %17, %15, %cst_20 {dimension_numbers = #tpu.dot_dimension_numbers<[1], [0], [0], [1], [0, 0, 1, 1], [], []>} : vector<8x3xbf16>, vector<3x128xbf16>, vector<8x128xf32> -> vector<8x128xf32>
    %19 = arith.addf %13, %18 : vector<8x128xf32>
    %c0_21 = arith.constant 0 : index
    %c0_22 = arith.constant 0 : index
    %c0_23 = arith.constant 0 : index
    %c10 = arith.constant 10 : index
    %20 = vector.load %arg2[%c0_21, %c0_22, %c0_23, %c10] : memref<1x1x3x150xbf16, #tpu.memory_space<vmem>>, vector<1x1x3x128xbf16>
    %21 = vector.shape_cast %20 : vector<1x1x3x128xbf16> to vector<3x128xbf16>
    %c3 = arith.constant 3 : index
    %c0_24 = arith.constant 0 : index
    %c0_25 = arith.constant 0 : index
    %22 = vector.load %arg5[%c3, %c0_24, %c0_25] : memref<27x8x3xbf16, #tpu.memory_space<vmem>>, vector<1x8x3xbf16>
    %23 = vector.shape_cast %22 : vector<1x8x3xbf16> to vector<8x3xbf16>
    %cst_26 = arith.constant dense<0.000000e+00> : vector<8x128xf32>
    %24 = tpu.matmul %23, %21, %cst_26 {dimension_numbers = #tpu.dot_dimension_numbers<[1], [0], [0], [1], [0, 0, 1, 1], [], []>} : vector<8x3xbf16>, vector<3x128xbf16>, vector<8x128xf32> -> vector<8x128xf32>
    %25 = arith.addf %19, %24 : vector<8x128xf32>
    %c0_27 = arith.constant 0 : index
    %c0_28 = arith.constant 0 : index
    %c0_29 = arith.constant 0 : index
    %c11 = arith.constant 11 : index
    %26 = vector.load %arg2[%c0_27, %c0_28, %c0_29, %c11] : memref<1x1x3x150xbf16, #tpu.memory_space<vmem>>, vector<1x1x3x128xbf16>
    %27 = vector.shape_cast %26 : vector<1x1x3x128xbf16> to vector<3x128xbf16>
    %c4 = arith.constant 4 : index
    %c0_30 = arith.constant 0 : index
    %c0_31 = arith.constant 0 : index
    %28 = vector.load %arg5[%c4, %c0_30, %c0_31] : memref<27x8x3xbf16, #tpu.memory_space<vmem>>, vector<1x8x3xbf16>
    %29 = vector.shape_cast %28 : vector<1x8x3xbf16> to vector<8x3xbf16>
    %cst_32 = arith.constant dense<0.000000e+00> : vector<8x128xf32>
    %30 = tpu.matmul %29, %27, %cst_32 {dimension_numbers = #tpu.dot_dimension_numbers<[1], [0], [0], [1], [0, 0, 1, 1], [], []>} : vector<8x3xbf16>, vector<3x128xbf16>, vector<8x128xf32> -> vector<8x128xf32>
    %31 = arith.addf %25, %30 : vector<8x128xf32>
    %c0_33 = arith.constant 0 : index
    %c0_34 = arith.constant 0 : index
    %c0_35 = arith.constant 0 : index
    %c12 = arith.constant 12 : index
    %32 = vector.load %arg2[%c0_33, %c0_34, %c0_35, %c12] : memref<1x1x3x150xbf16, #tpu.memory_space<vmem>>, vector<1x1x3x128xbf16>
    %33 = vector.shape_cast %32 : vector<1x1x3x128xbf16> to vector<3x128xbf16>
    %c5 = arith.constant 5 : index
    %c0_36 = arith.constant 0 : index
    %c0_37 = arith.constant 0 : index
    %34 = vector.load %arg5[%c5, %c0_36, %c0_37] : memref<27x8x3xbf16, #tpu.memory_space<vmem>>, vector<1x8x3xbf16>
    %35 = vector.shape_cast %34 : vector<1x8x3xbf16> to vector<8x3xbf16>
    %cst_38 = arith.constant dense<0.000000e+00> : vector<8x128xf32>
    %36 = tpu.matmul %35, %33, %cst_38 {dimension_numbers = #tpu.dot_dimension_numbers<[1], [0], [0], [1], [0, 0, 1, 1], [], []>} : vector<8x3xbf16>, vector<3x128xbf16>, vector<8x128xf32> -> vector<8x128xf32>
    %37 = arith.addf %31, %36 : vector<8x128xf32>
    %c0_39 = arith.constant 0 : index
    %c0_40 = arith.constant 0 : index
    %c0_41 = arith.constant 0 : index
    %c20 = arith.constant 20 : index
    %38 = vector.load %arg2[%c0_39, %c0_40, %c0_41, %c20] : memref<1x1x3x150xbf16, #tpu.memory_space<vmem>>, vector<1x1x3x128xbf16>
    %39 = vector.shape_cast %38 : vector<1x1x3x128xbf16> to vector<3x128xbf16>
    %c6 = arith.constant 6 : index
    %c0_42 = arith.constant 0 : index
    %c0_43 = arith.constant 0 : index
    %40 = vector.load %arg5[%c6, %c0_42, %c0_43] : memref<27x8x3xbf16, #tpu.memory_space<vmem>>, vector<1x8x3xbf16>
    %41 = vector.shape_cast %40 : vector<1x8x3xbf16> to vector<8x3xbf16>
    %cst_44 = arith.constant dense<0.000000e+00> : vector<8x128xf32>
    %42 = tpu.matmul %41, %39, %cst_44 {dimension_numbers = #tpu.dot_dimension_numbers<[1], [0], [0], [1], [0, 0, 1, 1], [], []>} : vector<8x3xbf16>, vector<3x128xbf16>, vector<8x128xf32> -> vector<8x128xf32>
    %43 = arith.addf %37, %42 : vector<8x128xf32>
    %c0_45 = arith.constant 0 : index
    %c0_46 = arith.constant 0 : index
    %c0_47 = arith.constant 0 : index
    %c21 = arith.constant 21 : index
    %44 = vector.load %arg2[%c0_45, %c0_46, %c0_47, %c21] : memref<1x1x3x150xbf16, #tpu.memory_space<vmem>>, vector<1x1x3x128xbf16>
    %45 = vector.shape_cast %44 : vector<1x1x3x128xbf16> to vector<3x128xbf16>
    %c7 = arith.constant 7 : index
    %c0_48 = arith.constant 0 : index
    %c0_49 = arith.constant 0 : index
    %46 = vector.load %arg5[%c7, %c0_48, %c0_49] : memref<27x8x3xbf16, #tpu.memory_space<vmem>>, vector<1x8x3xbf16>
    %47 = vector.shape_cast %46 : vector<1x8x3xbf16> to vector<8x3xbf16>
    %cst_50 = arith.constant dense<0.000000e+00> : vector<8x128xf32>
    %48 = tpu.matmul %47, %45, %cst_50 {dimension_numbers = #tpu.dot_dimension_numbers<[1], [0], [0], [1], [0, 0, 1, 1], [], []>} : vector<8x3xbf16>, vector<3x128xbf16>, vector<8x128xf32> -> vector<8x128xf32>
    %49 = arith.addf %43, %48 : vector<8x128xf32>
    %c0_51 = arith.constant 0 : index
    %c0_52 = arith.constant 0 : index
    %c0_53 = arith.constant 0 : index
    %c22 = arith.constant 22 : index
    %50 = vector.load %arg2[%c0_51, %c0_52, %c0_53, %c22] : memref<1x1x3x150xbf16, #tpu.memory_space<vmem>>, vector<1x1x3x128xbf16>
    %51 = vector.shape_cast %50 : vector<1x1x3x128xbf16> to vector<3x128xbf16>
    %c8 = arith.constant 8 : index
    %c0_54 = arith.constant 0 : index
    %c0_55 = arith.constant 0 : index
    %52 = vector.load %arg5[%c8, %c0_54, %c0_55] : memref<27x8x3xbf16, #tpu.memory_space<vmem>>, vector<1x8x3xbf16>
    %53 = vector.shape_cast %52 : vector<1x8x3xbf16> to vector<8x3xbf16>
    %cst_56 = arith.constant dense<0.000000e+00> : vector<8x128xf32>
    %54 = tpu.matmul %53, %51, %cst_56 {dimension_numbers = #tpu.dot_dimension_numbers<[1], [0], [0], [1], [0, 0, 1, 1], [], []>} : vector<8x3xbf16>, vector<3x128xbf16>, vector<8x128xf32> -> vector<8x128xf32>
    %55 = arith.addf %49, %54 : vector<8x128xf32>
    %c0_57 = arith.constant 0 : index
    %c0_58 = arith.constant 0 : index
    %c0_59 = arith.constant 0 : index
    %c0_60 = arith.constant 0 : index
    %56 = vector.load %arg3[%c0_57, %c0_58, %c0_59, %c0_60] : memref<1x1x3x150xbf16, #tpu.memory_space<vmem>>, vector<1x1x3x128xbf16>
    %57 = vector.shape_cast %56 : vector<1x1x3x128xbf16> to vector<3x128xbf16>
    %c9 = arith.constant 9 : index
    %c0_61 = arith.constant 0 : index
    %c0_62 = arith.constant 0 : index
    %58 = vector.load %arg5[%c9, %c0_61, %c0_62] : memref<27x8x3xbf16, #tpu.memory_space<vmem>>, vector<1x8x3xbf16>
    %59 = vector.shape_cast %58 : vector<1x8x3xbf16> to vector<8x3xbf16>
    %cst_63 = arith.constant dense<0.000000e+00> : vector<8x128xf32>
    %60 = tpu.matmul %59, %57, %cst_63 {dimension_numbers = #tpu.dot_dimension_numbers<[1], [0], [0], [1], [0, 0, 1, 1], [], []>} : vector<8x3xbf16>, vector<3x128xbf16>, vector<8x128xf32> -> vector<8x128xf32>
    %61 = arith.addf %55, %60 : vector<8x128xf32>
    %c0_64 = arith.constant 0 : index
    %c0_65 = arith.constant 0 : index
    %c0_66 = arith.constant 0 : index
    %c1_67 = arith.constant 1 : index
    %62 = vector.load %arg3[%c0_64, %c0_65, %c0_66, %c1_67] : memref<1x1x3x150xbf16, #tpu.memory_space<vmem>>, vector<1x1x3x128xbf16>
    %63 = vector.shape_cast %62 : vector<1x1x3x128xbf16> to vector<3x128xbf16>
    %c10_68 = arith.constant 10 : index
    %c0_69 = arith.constant 0 : index
    %c0_70 = arith.constant 0 : index
    %64 = vector.load %arg5[%c10_68, %c0_69, %c0_70] : memref<27x8x3xbf16, #tpu.memory_space<vmem>>, vector<1x8x3xbf16>
    %65 = vector.shape_cast %64 : vector<1x8x3xbf16> to vector<8x3xbf16>
    %cst_71 = arith.constant dense<0.000000e+00> : vector<8x128xf32>
    %66 = tpu.matmul %65, %63, %cst_71 {dimension_numbers = #tpu.dot_dimension_numbers<[1], [0], [0], [1], [0, 0, 1, 1], [], []>} : vector<8x3xbf16>, vector<3x128xbf16>, vector<8x128xf32> -> vector<8x128xf32>
    %67 = arith.addf %61, %66 : vector<8x128xf32>
    %c0_72 = arith.constant 0 : index
    %c0_73 = arith.constant 0 : index
    %c0_74 = arith.constant 0 : index
    %c2_75 = arith.constant 2 : index
    %68 = vector.load %arg3[%c0_72, %c0_73, %c0_74, %c2_75] : memref<1x1x3x150xbf16, #tpu.memory_space<vmem>>, vector<1x1x3x128xbf16>
    %69 = vector.shape_cast %68 : vector<1x1x3x128xbf16> to vector<3x128xbf16>
    %c11_76 = arith.constant 11 : index
    %c0_77 = arith.constant 0 : index
    %c0_78 = arith.constant 0 : index
    %70 = vector.load %arg5[%c11_76, %c0_77, %c0_78] : memref<27x8x3xbf16, #tpu.memory_space<vmem>>, vector<1x8x3xbf16>
    %71 = vector.shape_cast %70 : vector<1x8x3xbf16> to vector<8x3xbf16>
    %cst_79 = arith.constant dense<0.000000e+00> : vector<8x128xf32>
    %72 = tpu.matmul %71, %69, %cst_79 {dimension_numbers = #tpu.dot_dimension_numbers<[1], [0], [0], [1], [0, 0, 1, 1], [], []>} : vector<8x3xbf16>, vector<3x128xbf16>, vector<8x128xf32> -> vector<8x128xf32>
    %73 = arith.addf %67, %72 : vector<8x128xf32>
    %c0_80 = arith.constant 0 : index
    %c0_81 = arith.constant 0 : index
    %c0_82 = arith.constant 0 : index
    %c10_83 = arith.constant 10 : index
    %74 = vector.load %arg3[%c0_80, %c0_81, %c0_82, %c10_83] : memref<1x1x3x150xbf16, #tpu.memory_space<vmem>>, vector<1x1x3x128xbf16>
    %75 = vector.shape_cast %74 : vector<1x1x3x128xbf16> to vector<3x128xbf16>
    %c12_84 = arith.constant 12 : index
    %c0_85 = arith.constant 0 : index
    %c0_86 = arith.constant 0 : index
    %76 = vector.load %arg5[%c12_84, %c0_85, %c0_86] : memref<27x8x3xbf16, #tpu.memory_space<vmem>>, vector<1x8x3xbf16>
    %77 = vector.shape_cast %76 : vector<1x8x3xbf16> to vector<8x3xbf16>
    %cst_87 = arith.constant dense<0.000000e+00> : vector<8x128xf32>
    %78 = tpu.matmul %77, %75, %cst_87 {dimension_numbers = #tpu.dot_dimension_numbers<[1], [0], [0], [1], [0, 0, 1, 1], [], []>} : vector<8x3xbf16>, vector<3x128xbf16>, vector<8x128xf32> -> vector<8x128xf32>
    %79 = arith.addf %73, %78 : vector<8x128xf32>
    %c0_88 = arith.constant 0 : index
    %c0_89 = arith.constant 0 : index
    %c0_90 = arith.constant 0 : index
    %c11_91 = arith.constant 11 : index
    %80 = vector.load %arg3[%c0_88, %c0_89, %c0_90, %c11_91] : memref<1x1x3x150xbf16, #tpu.memory_space<vmem>>, vector<1x1x3x128xbf16>
    %81 = vector.shape_cast %80 : vector<1x1x3x128xbf16> to vector<3x128xbf16>
    %c13 = arith.constant 13 : index
    %c0_92 = arith.constant 0 : index
    %c0_93 = arith.constant 0 : index
    %82 = vector.load %arg5[%c13, %c0_92, %c0_93] : memref<27x8x3xbf16, #tpu.memory_space<vmem>>, vector<1x8x3xbf16>
    %83 = vector.shape_cast %82 : vector<1x8x3xbf16> to vector<8x3xbf16>
    %cst_94 = arith.constant dense<0.000000e+00> : vector<8x128xf32>
    %84 = tpu.matmul %83, %81, %cst_94 {dimension_numbers = #tpu.dot_dimension_numbers<[1], [0], [0], [1], [0, 0, 1, 1], [], []>} : vector<8x3xbf16>, vector<3x128xbf16>, vector<8x128xf32> -> vector<8x128xf32>
    %85 = arith.addf %79, %84 : vector<8x128xf32>
    %c0_95 = arith.constant 0 : index
    %c0_96 = arith.constant 0 : index
    %c0_97 = arith.constant 0 : index
    %c12_98 = arith.constant 12 : index
    %86 = vector.load %arg3[%c0_95, %c0_96, %c0_97, %c12_98] : memref<1x1x3x150xbf16, #tpu.memory_space<vmem>>, vector<1x1x3x128xbf16>
    %87 = vector.shape_cast %86 : vector<1x1x3x128xbf16> to vector<3x128xbf16>
    %c14 = arith.constant 14 : index
    %c0_99 = arith.constant 0 : index
    %c0_100 = arith.constant 0 : index
    %88 = vector.load %arg5[%c14, %c0_99, %c0_100] : memref<27x8x3xbf16, #tpu.memory_space<vmem>>, vector<1x8x3xbf16>
    %89 = vector.shape_cast %88 : vector<1x8x3xbf16> to vector<8x3xbf16>
    %cst_101 = arith.constant dense<0.000000e+00> : vector<8x128xf32>
    %90 = tpu.matmul %89, %87, %cst_101 {dimension_numbers = #tpu.dot_dimension_numbers<[1], [0], [0], [1], [0, 0, 1, 1], [], []>} : vector<8x3xbf16>, vector<3x128xbf16>, vector<8x128xf32> -> vector<8x128xf32>
    %91 = arith.addf %85, %90 : vector<8x128xf32>
    %c0_102 = arith.constant 0 : index
    %c0_103 = arith.constant 0 : index
    %c0_104 = arith.constant 0 : index
    %c20_105 = arith.constant 20 : index
    %92 = vector.load %arg3[%c0_102, %c0_103, %c0_104, %c20_105] : memref<1x1x3x150xbf16, #tpu.memory_space<vmem>>, vector<1x1x3x128xbf16>
    %93 = vector.shape_cast %92 : vector<1x1x3x128xbf16> to vector<3x128xbf16>
    %c15 = arith.constant 15 : index
    %c0_106 = arith.constant 0 : index
    %c0_107 = arith.constant 0 : index
    %94 = vector.load %arg5[%c15, %c0_106, %c0_107] : memref<27x8x3xbf16, #tpu.memory_space<vmem>>, vector<1x8x3xbf16>
    %95 = vector.shape_cast %94 : vector<1x8x3xbf16> to vector<8x3xbf16>
    %cst_108 = arith.constant dense<0.000000e+00> : vector<8x128xf32>
    %96 = tpu.matmul %95, %93, %cst_108 {dimension_numbers = #tpu.dot_dimension_numbers<[1], [0], [0], [1], [0, 0, 1, 1], [], []>} : vector<8x3xbf16>, vector<3x128xbf16>, vector<8x128xf32> -> vector<8x128xf32>
    %97 = arith.addf %91, %96 : vector<8x128xf32>
    %c0_109 = arith.constant 0 : index
    %c0_110 = arith.constant 0 : index
    %c0_111 = arith.constant 0 : index
    %c21_112 = arith.constant 21 : index
    %98 = vector.load %arg3[%c0_109, %c0_110, %c0_111, %c21_112] : memref<1x1x3x150xbf16, #tpu.memory_space<vmem>>, vector<1x1x3x128xbf16>
    %99 = vector.shape_cast %98 : vector<1x1x3x128xbf16> to vector<3x128xbf16>
    %c16 = arith.constant 16 : index
    %c0_113 = arith.constant 0 : index
    %c0_114 = arith.constant 0 : index
    %100 = vector.load %arg5[%c16, %c0_113, %c0_114] : memref<27x8x3xbf16, #tpu.memory_space<vmem>>, vector<1x8x3xbf16>
    %101 = vector.shape_cast %100 : vector<1x8x3xbf16> to vector<8x3xbf16>
    %cst_115 = arith.constant dense<0.000000e+00> : vector<8x128xf32>
    %102 = tpu.matmul %101, %99, %cst_115 {dimension_numbers = #tpu.dot_dimension_numbers<[1], [0], [0], [1], [0, 0, 1, 1], [], []>} : vector<8x3xbf16>, vector<3x128xbf16>, vector<8x128xf32> -> vector<8x128xf32>
    %103 = arith.addf %97, %102 : vector<8x128xf32>
    %c0_116 = arith.constant 0 : index
    %c0_117 = arith.constant 0 : index
    %c0_118 = arith.constant 0 : index
    %c22_119 = arith.constant 22 : index
    %104 = vector.load %arg3[%c0_116, %c0_117, %c0_118, %c22_119] : memref<1x1x3x150xbf16, #tpu.memory_space<vmem>>, vector<1x1x3x128xbf16>
    %105 = vector.shape_cast %104 : vector<1x1x3x128xbf16> to vector<3x128xbf16>
    %c17 = arith.constant 17 : index
    %c0_120 = arith.constant 0 : index
    %c0_121 = arith.constant 0 : index
    %106 = vector.load %arg5[%c17, %c0_120, %c0_121] : memref<27x8x3xbf16, #tpu.memory_space<vmem>>, vector<1x8x3xbf16>
    %107 = vector.shape_cast %106 : vector<1x8x3xbf16> to vector<8x3xbf16>
    %cst_122 = arith.constant dense<0.000000e+00> : vector<8x128xf32>
    %108 = tpu.matmul %107, %105, %cst_122 {dimension_numbers = #tpu.dot_dimension_numbers<[1], [0], [0], [1], [0, 0, 1, 1], [], []>} : vector<8x3xbf16>, vector<3x128xbf16>, vector<8x128xf32> -> vector<8x128xf32>
    %109 = arith.addf %103, %108 : vector<8x128xf32>
    %c0_123 = arith.constant 0 : index
    %c0_124 = arith.constant 0 : index
    %c0_125 = arith.constant 0 : index
    %c0_126 = arith.constant 0 : index
    %110 = vector.load %arg4[%c0_123, %c0_124, %c0_125, %c0_126] : memref<1x1x3x150xbf16, #tpu.memory_space<vmem>>, vector<1x1x3x128xbf16>
    %111 = vector.shape_cast %110 : vector<1x1x3x128xbf16> to vector<3x128xbf16>
    %c18 = arith.constant 18 : index
    %c0_127 = arith.constant 0 : index
    %c0_128 = arith.constant 0 : index
    %112 = vector.load %arg5[%c18, %c0_127, %c0_128] : memref<27x8x3xbf16, #tpu.memory_space<vmem>>, vector<1x8x3xbf16>
    %113 = vector.shape_cast %112 : vector<1x8x3xbf16> to vector<8x3xbf16>
    %cst_129 = arith.constant dense<0.000000e+00> : vector<8x128xf32>
    %114 = tpu.matmul %113, %111, %cst_129 {dimension_numbers = #tpu.dot_dimension_numbers<[1], [0], [0], [1], [0, 0, 1, 1], [], []>} : vector<8x3xbf16>, vector<3x128xbf16>, vector<8x128xf32> -> vector<8x128xf32>
    %115 = arith.addf %109, %114 : vector<8x128xf32>
    %c0_130 = arith.constant 0 : index
    %c0_131 = arith.constant 0 : index
    %c0_132 = arith.constant 0 : index
    %c1_133 = arith.constant 1 : index
    %116 = vector.load %arg4[%c0_130, %c0_131, %c0_132, %c1_133] : memref<1x1x3x150xbf16, #tpu.memory_space<vmem>>, vector<1x1x3x128xbf16>
    %117 = vector.shape_cast %116 : vector<1x1x3x128xbf16> to vector<3x128xbf16>
    %c19 = arith.constant 19 : index
    %c0_134 = arith.constant 0 : index
    %c0_135 = arith.constant 0 : index
    %118 = vector.load %arg5[%c19, %c0_134, %c0_135] : memref<27x8x3xbf16, #tpu.memory_space<vmem>>, vector<1x8x3xbf16>
    %119 = vector.shape_cast %118 : vector<1x8x3xbf16> to vector<8x3xbf16>
    %cst_136 = arith.constant dense<0.000000e+00> : vector<8x128xf32>
    %120 = tpu.matmul %119, %117, %cst_136 {dimension_numbers = #tpu.dot_dimension_numbers<[1], [0], [0], [1], [0, 0, 1, 1], [], []>} : vector<8x3xbf16>, vector<3x128xbf16>, vector<8x128xf32> -> vector<8x128xf32>
    %121 = arith.addf %115, %120 : vector<8x128xf32>
    %c0_137 = arith.constant 0 : index
    %c0_138 = arith.constant 0 : index
    %c0_139 = arith.constant 0 : index
    %c2_140 = arith.constant 2 : index
    %122 = vector.load %arg4[%c0_137, %c0_138, %c0_139, %c2_140] : memref<1x1x3x150xbf16, #tpu.memory_space<vmem>>, vector<1x1x3x128xbf16>
    %123 = vector.shape_cast %122 : vector<1x1x3x128xbf16> to vector<3x128xbf16>
    %c20_141 = arith.constant 20 : index
    %c0_142 = arith.constant 0 : index
    %c0_143 = arith.constant 0 : index
    %124 = vector.load %arg5[%c20_141, %c0_142, %c0_143] : memref<27x8x3xbf16, #tpu.memory_space<vmem>>, vector<1x8x3xbf16>
    %125 = vector.shape_cast %124 : vector<1x8x3xbf16> to vector<8x3xbf16>
    %cst_144 = arith.constant dense<0.000000e+00> : vector<8x128xf32>
    %126 = tpu.matmul %125, %123, %cst_144 {dimension_numbers = #tpu.dot_dimension_numbers<[1], [0], [0], [1], [0, 0, 1, 1], [], []>} : vector<8x3xbf16>, vector<3x128xbf16>, vector<8x128xf32> -> vector<8x128xf32>
    %127 = arith.addf %121, %126 : vector<8x128xf32>
    %c0_145 = arith.constant 0 : index
    %c0_146 = arith.constant 0 : index
    %c0_147 = arith.constant 0 : index
    %c10_148 = arith.constant 10 : index
    %128 = vector.load %arg4[%c0_145, %c0_146, %c0_147, %c10_148] : memref<1x1x3x150xbf16, #tpu.memory_space<vmem>>, vector<1x1x3x128xbf16>
    %129 = vector.shape_cast %128 : vector<1x1x3x128xbf16> to vector<3x128xbf16>
    %c21_149 = arith.constant 21 : index
    %c0_150 = arith.constant 0 : index
    %c0_151 = arith.constant 0 : index
    %130 = vector.load %arg5[%c21_149, %c0_150, %c0_151] : memref<27x8x3xbf16, #tpu.memory_space<vmem>>, vector<1x8x3xbf16>
    %131 = vector.shape_cast %130 : vector<1x8x3xbf16> to vector<8x3xbf16>
    %cst_152 = arith.constant dense<0.000000e+00> : vector<8x128xf32>
    %132 = tpu.matmul %131, %129, %cst_152 {dimension_numbers = #tpu.dot_dimension_numbers<[1], [0], [0], [1], [0, 0, 1, 1], [], []>} : vector<8x3xbf16>, vector<3x128xbf16>, vector<8x128xf32> -> vector<8x128xf32>
    %133 = arith.addf %127, %132 : vector<8x128xf32>
    %c0_153 = arith.constant 0 : index
    %c0_154 = arith.constant 0 : index
    %c0_155 = arith.constant 0 : index
    %c11_156 = arith.constant 11 : index
    %134 = vector.load %arg4[%c0_153, %c0_154, %c0_155, %c11_156] : memref<1x1x3x150xbf16, #tpu.memory_space<vmem>>, vector<1x1x3x128xbf16>
    %135 = vector.shape_cast %134 : vector<1x1x3x128xbf16> to vector<3x128xbf16>
    %c22_157 = arith.constant 22 : index
    %c0_158 = arith.constant 0 : index
    %c0_159 = arith.constant 0 : index
    %136 = vector.load %arg5[%c22_157, %c0_158, %c0_159] : memref<27x8x3xbf16, #tpu.memory_space<vmem>>, vector<1x8x3xbf16>
    %137 = vector.shape_cast %136 : vector<1x8x3xbf16> to vector<8x3xbf16>
    %cst_160 = arith.constant dense<0.000000e+00> : vector<8x128xf32>
    %138 = tpu.matmul %137, %135, %cst_160 {dimension_numbers = #tpu.dot_dimension_numbers<[1], [0], [0], [1], [0, 0, 1, 1], [], []>} : vector<8x3xbf16>, vector<3x128xbf16>, vector<8x128xf32> -> vector<8x128xf32>
    %139 = arith.addf %133, %138 : vector<8x128xf32>
    %c0_161 = arith.constant 0 : index
    %c0_162 = arith.constant 0 : index
    %c0_163 = arith.constant 0 : index
    %c12_164 = arith.constant 12 : index
    %140 = vector.load %arg4[%c0_161, %c0_162, %c0_163, %c12_164] : memref<1x1x3x150xbf16, #tpu.memory_space<vmem>>, vector<1x1x3x128xbf16>
    %141 = vector.shape_cast %140 : vector<1x1x3x128xbf16> to vector<3x128xbf16>
    %c23 = arith.constant 23 : index
    %c0_165 = arith.constant 0 : index
    %c0_166 = arith.constant 0 : index
    %142 = vector.load %arg5[%c23, %c0_165, %c0_166] : memref<27x8x3xbf16, #tpu.memory_space<vmem>>, vector<1x8x3xbf16>
    %143 = vector.shape_cast %142 : vector<1x8x3xbf16> to vector<8x3xbf16>
    %cst_167 = arith.constant dense<0.000000e+00> : vector<8x128xf32>
    %144 = tpu.matmul %143, %141, %cst_167 {dimension_numbers = #tpu.dot_dimension_numbers<[1], [0], [0], [1], [0, 0, 1, 1], [], []>} : vector<8x3xbf16>, vector<3x128xbf16>, vector<8x128xf32> -> vector<8x128xf32>
    %145 = arith.addf %139, %144 : vector<8x128xf32>
    %c0_168 = arith.constant 0 : index
    %c0_169 = arith.constant 0 : index
    %c0_170 = arith.constant 0 : index
    %c20_171 = arith.constant 20 : index
    %146 = vector.load %arg4[%c0_168, %c0_169, %c0_170, %c20_171] : memref<1x1x3x150xbf16, #tpu.memory_space<vmem>>, vector<1x1x3x128xbf16>
    %147 = vector.shape_cast %146 : vector<1x1x3x128xbf16> to vector<3x128xbf16>
    %c24 = arith.constant 24 : index
    %c0_172 = arith.constant 0 : index
    %c0_173 = arith.constant 0 : index
    %148 = vector.load %arg5[%c24, %c0_172, %c0_173] : memref<27x8x3xbf16, #tpu.memory_space<vmem>>, vector<1x8x3xbf16>
    %149 = vector.shape_cast %148 : vector<1x8x3xbf16> to vector<8x3xbf16>
    %cst_174 = arith.constant dense<0.000000e+00> : vector<8x128xf32>
    %150 = tpu.matmul %149, %147, %cst_174 {dimension_numbers = #tpu.dot_dimension_numbers<[1], [0], [0], [1], [0, 0, 1, 1], [], []>} : vector<8x3xbf16>, vector<3x128xbf16>, vector<8x128xf32> -> vector<8x128xf32>
    %151 = arith.addf %145, %150 : vector<8x128xf32>
    %c0_175 = arith.constant 0 : index
    %c0_176 = arith.constant 0 : index
    %c0_177 = arith.constant 0 : index
    %c21_178 = arith.constant 21 : index
    %152 = vector.load %arg4[%c0_175, %c0_176, %c0_177, %c21_178] : memref<1x1x3x150xbf16, #tpu.memory_space<vmem>>, vector<1x1x3x128xbf16>
    %153 = vector.shape_cast %152 : vector<1x1x3x128xbf16> to vector<3x128xbf16>
    %c25 = arith.constant 25 : index
    %c0_179 = arith.constant 0 : index
    %c0_180 = arith.constant 0 : index
    %154 = vector.load %arg5[%c25, %c0_179, %c0_180] : memref<27x8x3xbf16, #tpu.memory_space<vmem>>, vector<1x8x3xbf16>
    %155 = vector.shape_cast %154 : vector<1x8x3xbf16> to vector<8x3xbf16>
    %cst_181 = arith.constant dense<0.000000e+00> : vector<8x128xf32>
    %156 = tpu.matmul %155, %153, %cst_181 {dimension_numbers = #tpu.dot_dimension_numbers<[1], [0], [0], [1], [0, 0, 1, 1], [], []>} : vector<8x3xbf16>, vector<3x128xbf16>, vector<8x128xf32> -> vector<8x128xf32>
    %157 = arith.addf %151, %156 : vector<8x128xf32>
    %c0_182 = arith.constant 0 : index
    %c0_183 = arith.constant 0 : index
    %c0_184 = arith.constant 0 : index
    %c22_185 = arith.constant 22 : index
    %158 = vector.load %arg4[%c0_182, %c0_183, %c0_184, %c22_185] : memref<1x1x3x150xbf16, #tpu.memory_space<vmem>>, vector<1x1x3x128xbf16>
    %159 = vector.shape_cast %158 : vector<1x1x3x128xbf16> to vector<3x128xbf16>
    %c26 = arith.constant 26 : index
    %c0_186 = arith.constant 0 : index
    %c0_187 = arith.constant 0 : index
    %160 = vector.load %arg5[%c26, %c0_186, %c0_187] : memref<27x8x3xbf16, #tpu.memory_space<vmem>>, vector<1x8x3xbf16>
    %161 = vector.shape_cast %160 : vector<1x8x3xbf16> to vector<8x3xbf16>
    %cst_188 = arith.constant dense<0.000000e+00> : vector<8x128xf32>
    %162 = tpu.matmul %161, %159, %cst_188 {dimension_numbers = #tpu.dot_dimension_numbers<[1], [0], [0], [1], [0, 0, 1, 1], [], []>} : vector<8x3xbf16>, vector<3x128xbf16>, vector<8x128xf32> -> vector<8x128xf32>
    %163 = arith.addf %157, %162 : vector<8x128xf32>
    %c0_189 = arith.constant 0 : index
    %c0_190 = arith.constant 0 : index
    %164 = vector.load %arg6[%c0_189, %c0_190] : memref<8x1xf32, #tpu.memory_space<vmem>>, vector<8x1xf32>
    %165 = vector.broadcast %164 : vector<8x1xf32> to vector<8x128xf32>
    %166 = arith.addf %163, %165 : vector<8x128xf32>
    %cst_191 = arith.constant 0.000000e+00 : f32
    %167 = vector.broadcast %cst_191 : f32 to vector<8x128xf32>
    %168 = arith.maximumf %166, %167 : vector<8x128xf32>
    %c0_192 = arith.constant 0 : index
    %c0_193 = arith.constant 0 : index
    %169 = vector.load %arg7[%c0_192, %c0_193] : memref<1x128xf32, #tpu.memory_space<vmem>>, vector<1x128xf32>
    %170 = vector.broadcast %169 : vector<1x128xf32> to vector<8x128xf32>
    %171 = arith.mulf %168, %170 : vector<8x128xf32>
    %c0_194 = arith.constant 0 : index
    %c0_195 = arith.constant 0 : index
    %172 = vector.load %arg9[%c0_194, %c0_195] : memref<8x1xf32, #tpu.memory_space<vmem>>, vector<8x1xf32>
    %cst_196 = arith.constant dense<0.000000e+00> : vector<8xf32>
    %173 = vector.multi_reduction <add>, %171, %cst_196 [1] : vector<8x128xf32> to vector<8xf32>
    %174 = vector.shape_cast %173 : vector<8xf32> to vector<8x1xf32>
    %175 = arith.addf %172, %174 : vector<8x1xf32>
    %c0_197 = arith.constant 0 : index
    %c0_198 = arith.constant 0 : index
    %176 = vector.load %arg9[%c0_197, %c0_198] : memref<8x1xf32, #tpu.memory_space<vmem>>, vector<8x1xf32>
    tpu.vector_store %arg9[%c0_197, %c0_198], %175 {strides = array<i32>} : memref<8x1xf32, #tpu.memory_space<vmem>>, vector<8x1xf32>,
    %c7_i32 = arith.constant 7 : i32
    %177 = arith.cmpi eq, %arg1, %c7_i32 : i32
    %178 = arith.extui %177 : i1 to i32
    %c0_i32_199 = arith.constant 0 : i32
    %179 = arith.cmpi ne, %178, %c0_i32_199 : i32
    scf.if %179 {
      %c0_200 = arith.constant 0 : index
      %c0_201 = arith.constant 0 : index
      %180 = vector.load %arg9[%c0_200, %c0_201] : memref<8x1xf32, #tpu.memory_space<vmem>>, vector<8x1xf32>
      %cst_202 = arith.constant 0.001953125 : f32
      %181 = vector.broadcast %cst_202 : f32 to vector<8x1xf32>
      %182 = arith.mulf %180, %181 : vector<8x1xf32>
      %183 = vector.shape_cast %182 : vector<8x1xf32> to vector<8x1xf32>
      %184 = vector.broadcast %183 : vector<8x1xf32> to vector<8x128xf32>
      %c0_203 = arith.constant 0 : index
      %c0_204 = arith.constant 0 : index
      %c0_205 = arith.constant 0 : index
      %185 = vector.load %arg8[%c0_203, %c0_204, %c0_205] : memref<1x8x128xf32, #tpu.memory_space<vmem>>, vector<1x8x128xf32>
      %186 = vector.shape_cast %185 : vector<1x8x128xf32> to vector<8x128xf32>
      %187 = vector.shape_cast %184 : vector<8x128xf32> to vector<1x8x128xf32>
      tpu.vector_store %arg8[%c0_203, %c0_204, %c0_205], %187 {strides = array<i32>} : memref<1x8x128xf32, #tpu.memory_space<vmem>>, vector<1x8x128xf32>,
    } else {
    }
    return
  }
  func.func @transform_0(%arg0: i32, %arg1: i32) -> (i32, i32, i32, i32) {
    %c0_i32 = arith.constant 0 : i32
    %c0_i32_0 = arith.constant 0 : i32
    %c0_i32_1 = arith.constant 0 : i32
    return %arg0, %arg1, %c0_i32, %c0_i32_0 : i32, i32, i32, i32
  }
  func.func @transform_1(%arg0: i32, %arg1: i32) -> (i32, i32, i32, i32) {
    %c1_i32 = arith.constant 1 : i32
    %0 = arith.addi %arg1, %c1_i32 : i32
    %c0_i32 = arith.constant 0 : i32
    %c0_i32_0 = arith.constant 0 : i32
    %c0_i32_1 = arith.constant 0 : i32
    return %arg0, %0, %c0_i32, %c0_i32_0 : i32, i32, i32, i32
  }
  func.func @transform_2(%arg0: i32, %arg1: i32) -> (i32, i32, i32, i32) {
    %c2_i32 = arith.constant 2 : i32
    %0 = arith.addi %arg1, %c2_i32 : i32
    %c0_i32 = arith.constant 0 : i32
    %c0_i32_0 = arith.constant 0 : i32
    %c0_i32_1 = arith.constant 0 : i32
    return %arg0, %0, %c0_i32, %c0_i32_0 : i32, i32, i32, i32
  }
  func.func @transform_3(%arg0: i32, %arg1: i32) -> (i32, i32, i32) {
    %c0_i32 = arith.constant 0 : i32
    %c0_i32_0 = arith.constant 0 : i32
    %c0_i32_1 = arith.constant 0 : i32
    %c0_i32_2 = arith.constant 0 : i32
    return %c0_i32, %c0_i32_0, %c0_i32_1 : i32, i32, i32
  }
  func.func @transform_4(%arg0: i32, %arg1: i32) -> (i32, i32) {
    %c0_i32 = arith.constant 0 : i32
    %c0_i32_0 = arith.constant 0 : i32
    %c0_i32_1 = arith.constant 0 : i32
    return %c0_i32, %c0_i32_0 : i32, i32
  }
  func.func @transform_5(%arg0: i32, %arg1: i32) -> (i32, i32) {
    %c0_i32 = arith.constant 0 : i32
    %c0_i32_0 = arith.constant 0 : i32
    %c0_i32_1 = arith.constant 0 : i32
    return %c0_i32, %c0_i32_0 : i32, i32
  }
  func.func @transform_6(%arg0: i32, %arg1: i32) -> (i32, i32, i32) {
    %c0_i32 = arith.constant 0 : i32
    %c0_i32_0 = arith.constant 0 : i32
    %c0_i32_1 = arith.constant 0 : i32
    return %arg0, %c0_i32, %c0_i32_0 : i32, i32, i32
  }
}

</mosaic_0001>

<llo_original>
// kernel: tpu_custom_call.1
$region0: #{tpu_custom_call.1}
  #allocation0 [shape = 'u32[]', space=smem, size = 0x4, offset = 0x4, fixed_abs, tag = 'smem constant byte address 0x4 - core index']
  #allocation1 [shape = 'u32[144,128]{1,0:T(1,128)}', space=vmem, size = 0x12000, scoped, tag = 'internal scratch']
  #allocation2 [shape = 'f32[8,1]{1,0:T(8,128)}', space=vmem, size = 0x1000, scoped, tag = 'scratch operand']
  %s0 = inlined_call_operand.vmem [shape: bf16[2,10,3,150], index: 0, kind: input, shape index: {}]
  %s1 = inlined_call_operand.vmem [shape: bf16[2,10,3,150], index: 1, kind: input, shape index: {}]
  %s2 = inlined_call_operand.vmem [shape: bf16[2,10,3,150], index: 2, kind: input, shape index: {}]
  %s3 = inlined_call_operand.vmem [shape: bf16[27,8,3], index: 3, kind: input, shape index: {}]
  %s4 = inlined_call_operand.vmem [shape: f32[8,1], index: 4, kind: input, shape index: {}]
  %s5 = inlined_call_operand.vmem [shape: f32[1,128], index: 5, kind: input, shape index: {}]
  %s6 = inlined_call_operand.hbm [shape: f32[2,8,128], index: 6, kind: output, shape index: {}]
  %s7 = sld [smem:[#allocation0]]
  $region65: #{tpu_custom_call.1} parent=0
    _
  %s9 = ssub.s32 1, %s7
  %s10 = scalar_select 0, %s9, %s7
  $region1: #{tpu_custom_call.1} parent=0
    #allocation3 [shape = 'u8[8192]{0}', space=vmem, size = 0x2000, scoped, tag = 'output window, operand 0']
    #allocation4 [shape = 's32[2]{0}', space=sflag, size = 0x8, scoped, tag = 'scoped memory for tpu_custom_call.1']
    %11 = vsyncpa [#allocation4], 0
    %s12 = scalar_lea.sflag [#allocation4], 1
    %13 = vsyncpa %s12, 0
    loop: start=0, step=1, limit=18
    $region2: #{tpu_custom_call.1} parent=1 // loop_pre_header
      _
    $region3: #{tpu_custom_call.1} parent=1 // loop_header
      %s15 = sphi 0, %s19
      %p16 = scmp.ge.s32.totalorder %s15, 18
      %s22 = sphi 0, %s34
      %s23 = sphi 0, %s30
      %s24 = sphi 0, %s22
      %s25 = sphi 0, %s23
      %s26 = sphi 0, %s24
      %s27 = sphi 0, %s25
      %s39 = sphi 0, %s41
      %s42 = sphi 0, %s39
      %s43 = sphi 0, %s42
      %s59 = sphi 0, %s43
      %s69 = sphi 0, %s71
      %s72 = sphi 0, %s69
      %s73 = sphi 0, %s72
      %s89 = sphi 0, %s73
      %s99 = sphi 0, %s101
      %s102 = sphi 0, %s99
      %s103 = sphi 0, %s102
      %s119 = sphi 0, %s103
      %s123 = sphi 0, %s123
      %s125 = sphi 0, %s123
      %s126 = sphi 0, %s125
      %s140 = sphi 0, %s126
      %s144 = sphi 0, %s144
      %s146 = sphi 0, %s144
      %s147 = sphi 0, %s146
      %s161 = sphi 0, %s147
      %s165 = sphi 0, %s165
      %s167 = sphi 0, %s165
      %s168 = sphi 0, %s167
      %s182 = sphi 0, %s168
      %s188 = sphi 0, %s190
      %s191 = sphi 0, %s188
      %s192 = sphi 0, %s191
      %s208 = sphi 0, %s192
    $region4: #{tpu_custom_call.1} parent=1 // loop_header_branch
      %18 = sbr.rel (%p16) target = $region8
    $region5: #{tpu_custom_call.1} parent=1 // loop_body
      %s20 = ssub.s32 %s15, 1
      %s21 = ssub.s32 %s15, 2
      %s28 = sadd.s32 1, %s23
      %p29 = scmp.ge.s32.totalorder %s28, 8
      %s30 = scalar_select %p29, 0, %s28
      %s31 = sadd.s32 1, %s22
      %s32 = scalar_select %p29, %s31, %s22
      %p33 = scmp.ge.s32.totalorder %s32, 2
      %s34 = scalar_select %p33, 0, %s32
      %s35 = ssub.s32 %s22, %s34
      %s36 = ssub.s32 %s23, %s30
      %s37 = sor.u32 %s35, %s36
      %p38 = scmp.eq.s32.totalorder %s37, 0
      %s40 = sadd.s32 %s39, 1
      %s41 = scalar_select %p38, %s39, %s40
      %p44 = pneg %p38
      %p45 = scmp.eq.s32.totalorder %s15, 15
      %p46 = por %p44, %p45
      %p47 = scmp.ne.s32.totalorder %s39, %s42
      %p48 = scmp.eq.s32.totalorder %s15, 0
      %p49 = por %p47, %p48
      %p50 = scmp.ne.s32.totalorder %s39, %s42
      %p51 = scmp.eq.s32.totalorder %s20, 15
      %p52 = por %p50, %p51
      %p53 = scmp.ne.s32.totalorder %s42, %s43
      %p54 = scmp.eq.s32.totalorder %s20, 0
      %p55 = por %p53, %p54
      %p56 = scmp.ne.s32.totalorder %s42, %s43
      %p57 = scmp.eq.s32.totalorder %s21, 15
      %p58 = por %p56, %p57
      %p60 = scmp.ne.s32.totalorder %s43, %s59
      %p61 = scmp.eq.s32.totalorder %s21, 0
      %p62 = por %p60, %p61
      %s63 = sadd.s32 %s23, 1
      %s64 = sadd.s32 %s30, 1
      %s65 = ssub.s32 %s22, %s34
      %s66 = ssub.s32 %s63, %s64
      %s67 = sor.u32 %s65, %s66
      %p68 = scmp.eq.s32.totalorder %s67, 0
      %s70 = sadd.s32 %s69, 1
      %s71 = scalar_select %p68, %s69, %s70
      %p74 = pneg %p68
      %p75 = scmp.eq.s32.totalorder %s15, 15
      %p76 = por %p74, %p75
      %p77 = scmp.ne.s32.totalorder %s69, %s72
      %p78 = scmp.eq.s32.totalorder %s15, 0
      %p79 = por %p77, %p78
      %p80 = scmp.ne.s32.totalorder %s69, %s72
      %p81 = scmp.eq.s32.totalorder %s20, 15
      %p82 = por %p80, %p81
      %p83 = scmp.ne.s32.totalorder %s72, %s73
      %p84 = scmp.eq.s32.totalorder %s20, 0
      %p85 = por %p83, %p84
      %p86 = scmp.ne.s32.totalorder %s72, %s73
      %p87 = scmp.eq.s32.totalorder %s21, 15
      %p88 = por %p86, %p87
      %p90 = scmp.ne.s32.totalorder %s73, %s89
      %p91 = scmp.eq.s32.totalorder %s21, 0
      %p92 = por %p90, %p91
      %s93 = sadd.s32 %s23, 2
      %s94 = sadd.s32 %s30, 2
      %s95 = ssub.s32 %s22, %s34
      %s96 = ssub.s32 %s93, %s94
      %s97 = sor.u32 %s95, %s96
      %p98 = scmp.eq.s32.totalorder %s97, 0
      %s100 = sadd.s32 %s99, 1
      %s101 = scalar_select %p98, %s99, %s100
      %p104 = pneg %p98
      %p105 = scmp.eq.s32.totalorder %s15, 15
      %p106 = por %p104, %p105
      %p107 = scmp.ne.s32.totalorder %s99, %s102
      %p108 = scmp.eq.s32.totalorder %s15, 0
      %p109 = por %p107, %p108
      %p110 = scmp.ne.s32.totalorder %s99, %s102
      %p111 = scmp.eq.s32.totalorder %s20, 15
      %p112 = por %p110, %p111
      %p113 = scmp.ne.s32.totalorder %s102, %s103
      %p114 = scmp.eq.s32.totalorder %s20, 0
      %p115 = por %p113, %p114
      %p116 = scmp.ne.s32.totalorder %s102, %s103
      %p117 = scmp.eq.s32.totalorder %s21, 15
      %p118 = por %p116, %p117
      %p120 = scmp.ne.s32.totalorder %s103, %s119
      %p121 = scmp.eq.s32.totalorder %s21, 0
      %p122 = por %p120, %p121
      %s124 = sadd.s32 %s123, 1
      %p127 = scmp.eq.s32.totalorder %s15, 15
      %p128 = scmp.ne.s32.totalorder %s123, %s125
      %p129 = scmp.eq.s32.totalorder %s15, 0
      %p130 = por %p128, %p129
      %p131 = scmp.ne.s32.totalorder %s123, %s125
      %p132 = scmp.eq.s32.totalorder %s20, 15
      %p133 = por %p131, %p132
      %p134 = scmp.ne.s32.totalorder %s125, %s126
      %p135 = scmp.eq.s32.totalorder %s20, 0
      %p136 = por %p134, %p135
      %p137 = scmp.ne.s32.totalorder %s125, %s126
      %p138 = scmp.eq.s32.totalorder %s21, 15
      %p139 = por %p137, %p138
      %p141 = scmp.ne.s32.totalorder %s126, %s140
      %p142 = scmp.eq.s32.totalorder %s21, 0
      %p143 = por %p141, %p142
      %s145 = sadd.s32 %s144, 1
      %p148 = scmp.eq.s32.totalorder %s15, 15
      %p149 = scmp.ne.s32.totalorder %s144, %s146
      %p150 = scmp.eq.s32.totalorder %s15, 0
      %p151 = por %p149, %p150
      %p152 = scmp.ne.s32.totalorder %s144, %s146
      %p153 = scmp.eq.s32.totalorder %s20, 15
      %p154 = por %p152, %p153
      %p155 = scmp.ne.s32.totalorder %s146, %s147
      %p156 = scmp.eq.s32.totalorder %s20, 0
      %p157 = por %p155, %p156
      %p158 = scmp.ne.s32.totalorder %s146, %s147
      %p159 = scmp.eq.s32.totalorder %s21, 15
      %p160 = por %p158, %p159
      %p162 = scmp.ne.s32.totalorder %s147, %s161
      %p163 = scmp.eq.s32.totalorder %s21, 0
      %p164 = por %p162, %p163
      %s166 = sadd.s32 %s165, 1
      %p169 = scmp.eq.s32.totalorder %s15, 15
      %p170 = scmp.ne.s32.totalorder %s165, %s167
      %p171 = scmp.eq.s32.totalorder %s15, 0
      %p172 = por %p170, %p171
      %p173 = scmp.ne.s32.totalorder %s165, %s167
      %p174 = scmp.eq.s32.totalorder %s20, 15
      %p175 = por %p173, %p174
      %p176 = scmp.ne.s32.totalorder %s167, %s168
      %p177 = scmp.eq.s32.totalorder %s20, 0
      %p178 = por %p176, %p177
      %p179 = scmp.ne.s32.totalorder %s167, %s168
      %p180 = scmp.eq.s32.totalorder %s21, 15
      %p181 = por %p179, %p180
      %p183 = scmp.ne.s32.totalorder %s168, %s182
      %p184 = scmp.eq.s32.totalorder %s21, 0
      %p185 = por %p183, %p184
      %s186 = ssub.s32 %s22, %s34
      %p187 = scmp.eq.s32.totalorder %s186, 0
      %s189 = sadd.s32 %s188, 1
      %s190 = scalar_select %p187, %s188, %s189
      %p193 = pneg %p187
      %p194 = scmp.eq.s32.totalorder %s15, 15
      %p195 = por %p193, %p194
      %p196 = scmp.ne.s32.totalorder %s188, %s191
      %p197 = scmp.eq.s32.totalorder %s15, 0
      %p198 = por %p196, %p197
      %p199 = scmp.ne.s32.totalorder %s188, %s191
      %p200 = scmp.eq.s32.totalorder %s20, 15
      %p201 = por %p199, %p200
      %p202 = scmp.ne.s32.totalorder %s191, %s192
      %p203 = scmp.eq.s32.totalorder %s20, 0
      %p204 = por %p202, %p203
      %p205 = scmp.ne.s32.totalorder %s191, %s192
      %p206 = scmp.eq.s32.totalorder %s21, 15
      %p207 = por %p205, %p206
      %p209 = scmp.ne.s32.totalorder %s192, %s208
      %p210 = scmp.eq.s32.totalorder %s21, 0
      %p211 = por %p209, %p210
      %p212 = scmp.le.s32.totalorder 1, %s15
      %p213 = scmp.lt.s32.totalorder %s15, 17
      %p214 = pnand %p212, %p213
      %p215 = pneg %p214
      // Predicated region
      $region9: #{tpu_custom_call.1} parent=5 // pred_check
        _
      $region10: #{tpu_custom_call.1} parent=5 // pred_check_branch
        %217 = sbr.rel (%p214) target = $region12
      $region11: #{tpu_custom_call.1} parent=5 // pred_region
        %s218 = ssub.s32 %s15, 1
        // Predicated region
        $region13: #{tpu_custom_call.1} parent=11 // pred_check
          %p219 = pneg %p136
        $region14: #{tpu_custom_call.1} parent=11 // pred_check_branch
          %221 = sbr.rel (%p219) target = $region16
        $region15: #{tpu_custom_call.1} parent=11 // pred_region
          _
        $region16: #{tpu_custom_call.1} parent=11 // pred_fallthru
          _
        // Predicated region
        $region17: #{tpu_custom_call.1} parent=11 // pred_check
          %p222 = pneg %p157
        $region18: #{tpu_custom_call.1} parent=11 // pred_check_branch
          %224 = sbr.rel (%p222) target = $region20
        $region19: #{tpu_custom_call.1} parent=11 // pred_region
          _
        $region20: #{tpu_custom_call.1} parent=11 // pred_fallthru
          _
        // Predicated region
        $region21: #{tpu_custom_call.1} parent=11 // pred_check
          %p225 = pneg %p178
        $region22: #{tpu_custom_call.1} parent=11 // pred_check_branch
          %227 = sbr.rel (%p225) target = $region24
        $region23: #{tpu_custom_call.1} parent=11 // pred_region
          _
        $region24: #{tpu_custom_call.1} parent=11 // pred_fallthru
          _
      $region12: #{tpu_custom_call.1} parent=5 // pred_fallthru
        _
      %p228 = scmp.lt.s32.totalorder %s15, 16
      // Predicated region
      $region25: #{tpu_custom_call.1} parent=5 // pred_check
        %p229 = pneg %p228
      $region26: #{tpu_custom_call.1} parent=5 // pred_check_branch
        %231 = sbr.rel (%p229) target = $region28
      $region27: #{tpu_custom_call.1} parent=5 // pred_region
        // Predicated region
        $region29: #{tpu_custom_call.1} parent=27 // pred_check
          %p232 = pneg %p49
        $region30: #{tpu_custom_call.1} parent=27 // pred_check_branch
          %234 = sbr.rel (%p232) target = $region32
        $region31: #{tpu_custom_call.1} parent=27 // pred_region
          %p235 = scmp.lt.s32.totalorder %s22, 1
          %s236 = scalar_select %p235, %s22, 1
          %p237 = scmp.lt.s32.totalorder %s23, 9
          %s238 = scalar_select %p237, %s23, 9
          %s239 = smul.addr %s238, 2
          %s240 = smul.addr %s236, 20
          %s241 = sadd.s32 %s239, %s240
          %s242 = smul.addr %s241, 2
          %s243 = scalar_lea.vmem %s0, %s242
        $region32: #{tpu_custom_call.1} parent=27 // pred_fallthru
          _
        // Predicated region
        $region33: #{tpu_custom_call.1} parent=27 // pred_check
          %p244 = pneg %p79
        $region34: #{tpu_custom_call.1} parent=27 // pred_check_branch
          %246 = sbr.rel (%p244) target = $region36
        $region35: #{tpu_custom_call.1} parent=27 // pred_region
          %s247 = sadd.s32 %s23, 1
          %p248 = scmp.lt.s32.totalorder %s22, 1
          %s249 = scalar_select %p248, %s22, 1
          %p250 = scmp.lt.s32.totalorder %s247, 9
          %s251 = scalar_select %p250, %s247, 9
          %s252 = smul.addr %s251, 2
          %s253 = smul.addr %s249, 20
          %s254 = sadd.s32 %s252, %s253
          %s255 = smul.addr %s254, 2
          %s256 = scalar_lea.vmem %s1, %s255
          %s257 = sadd.s32 %s23, 1
        $region36: #{tpu_custom_call.1} parent=27 // pred_fallthru
          _
        // Predicated region
        $region37: #{tpu_custom_call.1} parent=27 // pred_check
          %p258 = pneg %p109
        $region38: #{tpu_custom_call.1} parent=27 // pred_check_branch
          %260 = sbr.rel (%p258) target = $region40
        $region39: #{tpu_custom_call.1} parent=27 // pred_region
          %s261 = sadd.s32 %s23, 2
          %p262 = scmp.lt.s32.totalorder %s22, 1
          %s263 = scalar_select %p262, %s22, 1
          %p264 = scmp.lt.s32.totalorder %s261, 9
          %s265 = scalar_select %p264, %s261, 9
          %s266 = smul.addr %s265, 2
          %s267 = smul.addr %s263, 20
          %s268 = sadd.s32 %s266, %s267
          %s269 = smul.addr %s268, 2
          %s270 = scalar_lea.vmem %s2, %s269
          %s271 = sadd.s32 %s23, 2
        $region40: #{tpu_custom_call.1} parent=27 // pred_fallthru
          _
      $region28: #{tpu_custom_call.1} parent=5 // pred_fallthru
        _
      %p272 = scmp.le.s32.totalorder 1, %s15
      %p273 = scmp.lt.s32.totalorder %s15, 17
      %p274 = pnand %p272, %p273
      %p275 = pneg %p274
      // Predicated region
      $region41: #{tpu_custom_call.1} parent=5 // pred_check
        _
      $region42: #{tpu_custom_call.1} parent=5 // pred_check_branch
        %277 = sbr.rel (%p274) target = $region44
      $region43: #{tpu_custom_call.1} parent=5 // pred_region
        %s278 = ssub.s32 %s15, 1
        %p279 = scmp.lt.s32.totalorder %s24, 1
        %s280 = scalar_select %p279, %s24, 1
        %p281 = scmp.lt.s32.totalorder %s25, 9
        %s282 = scalar_select %p281, %s25, 9
        %s283 = smul.addr %s282, 2
        %s284 = smul.addr %s280, 20
        %s285 = sadd.s32 %s283, %s284
        %s286 = smul.addr %s285, 2
        %s287 = scalar_lea.vmem %s0, %s286
        %p288 = pneg %p55
        %p289 = pneg %p52
        %s290 = sadd.s32 %s25, 1
        %p291 = scmp.lt.s32.totalorder %s24, 1
        %s292 = scalar_select %p291, %s24, 1
        %p293 = scmp.lt.s32.totalorder %s290, 9
        %s294 = scalar_select %p293, %s290, 9
        %s295 = smul.addr %s294, 2
        %s296 = smul.addr %s292, 20
        %s297 = sadd.s32 %s295, %s296
        %s298 = smul.addr %s297, 2
        %s299 = scalar_lea.vmem %s1, %s298
        %p300 = pneg %p85
        %p301 = pneg %p82
        %s302 = sadd.s32 %s25, 2
        %p303 = scmp.lt.s32.totalorder %s24, 1
        %s304 = scalar_select %p303, %s24, 1
        %p305 = scmp.lt.s32.totalorder %s302, 9
        %s306 = scalar_select %p305, %s302, 9
        %s307 = smul.addr %s306, 2
        %s308 = smul.addr %s304, 20
        %s309 = sadd.s32 %s307, %s308
        %s310 = smul.addr %s309, 2
        %s311 = scalar_lea.vmem %s2, %s310
        %p312 = pneg %p115
        %p313 = pneg %p112
        %p314 = pneg %p136
        %p315 = pneg %p133
        %p316 = pneg %p157
        %p317 = pneg %p154
        %p318 = pneg %p178
        %p319 = pneg %p175
        %p320 = pneg %p204
        %p321 = pneg %p201
        %s322 = sand.u32 %s191, 1
        %s323 = scalar_lea.sflag [#allocation4], %s322
        %s324 = sand.u32 %s191, 1
        %s325 = smul.addr %s324, 8
        %s326 = scalar_lea.vmem [#allocation3], %s325
        %p327 = scmp.lt.s32.totalorder %s24, 1
        %s328 = scalar_select %p327, %s24, 1
        %p329 = scmp.lt.s32.totalorder %s25, 9
        %s330 = scalar_select %p329, %s25, 9
        %s331 = smul.addr %s330, 2
        %s332 = smul.addr %s328, 20
        %s333 = sadd.s32 %s331, %s332
        %s334 = smul.addr %s333, 2
        %s335 = scalar_lea.vmem %s0, %s334
        %s336 = sadd.s32 %s25, 1
        %p337 = scmp.lt.s32.totalorder %s24, 1
        %s338 = scalar_select %p337, %s24, 1
        %p339 = scmp.lt.s32.totalorder %s336, 9
        %s340 = scalar_select %p339, %s336, 9
        %s341 = smul.addr %s340, 2
        %s342 = smul.addr %s338, 20
        %s343 = sadd.s32 %s341, %s342
        %s344 = smul.addr %s343, 2
        %s345 = scalar_lea.vmem %s1, %s344
        %s346 = sadd.s32 %s25, 1
        %s347 = sadd.s32 %s25, 2
        %p348 = scmp.lt.s32.totalorder %s24, 1
        %s349 = scalar_select %p348, %s24, 1
        %p350 = scmp.lt.s32.totalorder %s347, 9
        %s351 = scalar_select %p350, %s347, 9
        %s352 = smul.addr %s351, 2
        %s353 = smul.addr %s349, 20
        %s354 = sadd.s32 %s352, %s353
        %s355 = smul.addr %s354, 2
        %s356 = scalar_lea.vmem %s2, %s355
        %s357 = sadd.s32 %s25, 2
        %p359 = scmp.eq.s32.totalorder %s25, 0
        // Predicated region
        $region45: #{tpu_custom_call.1} parent=43 // pred_check
          %p360 = pneg %p359
        $region46: #{tpu_custom_call.1} parent=43 // pred_check_branch
          %362 = sbr.rel (%p360) target = $region48
        $region47: #{tpu_custom_call.1} parent=43 // pred_region
          %vm363 = vcmask 7168
          %364 = vst.msk [vmem:[#allocation2] sm:$0xff] %vm363, 0.0
        $region48: #{tpu_custom_call.1} parent=43 // pred_fallthru
          _
        %v365 = vld [vmem:[%s335] sm:$0x3]
        %v366 = vld [vmem:[%s3] sm:$0xf]
        %v367 = vld [vmem:[%s335] sm:$0xf]
        %s368 = scalar_lea.vmem %s3, 4
        %v369 = vld [vmem:[%s368] sm:$0xf]
        %v372 = vunpack.c.l.s4 1983009808
        %v373 = vunpack.c.0.s8 %v372
        %v374 = vlaneseq
        %v375 = vshrl.u32 %v374, 7
        %v376 = vsub.s32 %v373, %v375
        %v377 = vrot.slane %v367, %v376
        %v378 = vcombine.high %v377, %v377
        %379 = vrot.lane.b32.xlu0 %v377, 127
        %v380 = vpop.permute.xlu0 %379
        %381 = vrot.lane.b32.xlu0 %v378, 127
        %v382 = vpop.permute.xlu0 %381
        %vm383 = vcmask 1039360
        %v384 = vsel %vm383, %v380, %v382
        %vm385 = vcmask 23552
        %v387 = vsel %vm385, %v369, 0
        %vm389 = vcmask 1040384
        %vm390 = vcmask 1041408
        %v391 = vsel %vm389, 4294967295, 65535
        %v392 = vsel %vm390, %v391, 0
        %v394 = vand.u32 %v384, %v392
        %396 = vmatprep.subr.bf16.mxu0 0
        %397 = vmatpush1.bf16.msra.mxu0 0
        %398 = vmatprep.subr.bf16.mxu0 0
        %399 = vmatpush1.bf16.msra.mxu0 0
        %400 = vmatprep.subr.bf16.mxu0 0
        %401 = vmatpush1.bf16.msra.mxu0 0
        %402 = vmatprep.subr.bf16.mxu0 0
        %403 = vmatpush1.bf16.msra.mxu0 0
        %404 = vmatprep.subr.bf16.mxu0 0
        %405 = vmatpush1.bf16.msra.mxu0 0
        %406 = vmatprep.subr.bf16.mxu0 0
        %407 = vmatpush1.bf16.msra.mxu0 0
        %408 = vmatprep.subr.bf16.mxu0 0
        %409 = vmatpush1.bf16.msra.mxu0 0
        %410 = vmatprep.subr.bf16.mxu0 0
        %411 = vmatpush1.bf16.msra.mxu0 %v394
        %412 = vmatprep.subr.bf16.mxu0 0
        %413 = vmatpush2.bf16.msra.mxu0 0
        %414 = vmatprep.subr.bf16.mxu0 0
        %415 = vmatpush2.bf16.msra.mxu0 0
        %416 = vmatprep.subr.bf16.mxu0 0
        %417 = vmatpush2.bf16.msra.mxu0 0
        %418 = vmatprep.subr.bf16.mxu0 0
        %419 = vmatpush2.bf16.msra.mxu0 0
        %420 = vmatprep.subr.bf16.mxu0 0
        %421 = vmatpush2.bf16.msra.mxu0 0
        %422 = vmatprep.subr.bf16.mxu0 0
        %423 = vmatpush2.bf16.msra.mxu0 0
        %424 = vmatprep.subr.bf16.mxu0 0
        %425 = vmatpush2.bf16.msra.mxu0 0
        %426 = vmatprep.subr.bf16.mxu0 0
        %427 = vmatpush2.bf16.msra.mxu0 0
        %428 = vmatprep.mubr.bf16.mxu0 0
        %429 = vmatmul.mubr.bf16.gmra.mxu0 %v387
        %v430 = vpop.f32.mrf.mxu0
        %v431 = vadd.f32 0.0, %v430
        %v432 = vpop.f32.mrf.mxu0
        %v433 = vpop.f32.mrf.mxu0
        %v434 = vpop.f32.mrf.mxu0
        %435 = vdwg.mxu0
        %v437 = vsel %vm385, %v366, 0
        %v440 = vand.u32 %v365, %v392
        %442 = vmatprep.subr.bf16.mxu0 0
        %443 = vmatpush1.bf16.msra.mxu0 0
        %444 = vmatprep.subr.bf16.mxu0 0
        %445 = vmatpush1.bf16.msra.mxu0 0
        %446 = vmatprep.subr.bf16.mxu0 0
        %447 = vmatpush1.bf16.msra.mxu0 0
        %448 = vmatprep.subr.bf16.mxu0 0
        %449 = vmatpush1.bf16.msra.mxu0 0
        %450 = vmatprep.subr.bf16.mxu0 0
        %451 = vmatpush1.bf16.msra.mxu0 0
        %452 = vmatprep.subr.bf16.mxu0 0
        %453 = vmatpush1.bf16.msra.mxu0 0
        %454 = vmatprep.subr.bf16.mxu0 0
        %455 = vmatpush1.bf16.msra.mxu0 0
        %456 = vmatprep.subr.bf16.mxu0 0
        %457 = vmatpush1.bf16.msra.mxu0 %v440
        %458 = vmatprep.subr.bf16.mxu0 0
        %459 = vmatpush2.bf16.msra.mxu0 0
        %460 = vmatprep.subr.bf16.mxu0 0
        %461 = vmatpush2.bf16.msra.mxu0 0
        %462 = vmatprep.subr.bf16.mxu0 0
        %463 = vmatpush2.bf16.msra.mxu0 0
        %464 = vmatprep.subr.bf16.mxu0 0
        %465 = vmatpush2.bf16.msra.mxu0 0
        %466 = vmatprep.subr.bf16.mxu0 0
        %467 = vmatpush2.bf16.msra.mxu0 0
        %468 = vmatprep.subr.bf16.mxu0 0
        %469 = vmatpush2.bf16.msra.mxu0 0
        %470 = vmatprep.subr.bf16.mxu0 0
        %471 = vmatpush2.bf16.msra.mxu0 0
        %472 = vmatprep.subr.bf16.mxu0 0
        %473 = vmatpush2.bf16.msra.mxu0 0
        %474 = vmatprep.mubr.bf16.mxu0 0
        %475 = vmatmul.mubr.bf16.gmra.mxu0 %v437
        %v476 = vpop.f32.mrf.mxu0
        %v477 = vadd.f32 %v431, %v476
        %v478 = vpop.f32.mrf.mxu0
        %v479 = vpop.f32.mrf.mxu0
        %v480 = vpop.f32.mrf.mxu0
        %481 = vdwg.mxu0
        %v482 = vld [vmem:[%s335] sm:$0xf]
        %s483 = scalar_lea.vmem %s3, 8
        %v484 = vld [vmem:[%s483] sm:$0xf]
        %v487 = vunpack.c.l.s4 1983009808
        %v488 = vunpack.c.0.s8 %v487
        %v489 = vlaneseq
        %v490 = vshrl.u32 %v489, 7
        %v491 = vsub.s32 %v488, %v490
        %v492 = vrot.slane %v482, %v491
        %v493 = vcombine.high %v492, %v492
        %494 = vrot.lane.b32.xlu0 %v492, 126
        %v495 = vpop.permute.xlu0 %494
        %496 = vrot.lane.b32.xlu0 %v493, 126
        %v497 = vpop.permute.xlu0 %496
        %vm498 = vcmask 1031168
        %v499 = vsel %vm498, %v495, %v497
        %v501 = vsel %vm385, %v484, 0
        %v504 = vand.u32 %v499, %v392
        %506 = vmatprep.subr.bf16.mxu0 0
        %507 = vmatpush1.bf16.msra.mxu0 0
        %508 = vmatprep.subr.bf16.mxu0 0
        %509 = vmatpush1.bf16.msra.mxu0 0
        %510 = vmatprep.subr.bf16.mxu0 0
        %511 = vmatpush1.bf16.msra.mxu0 0
        %512 = vmatprep.subr.bf16.mxu0 0
        %513 = vmatpush1.bf16.msra.mxu0 0
        %514 = vmatprep.subr.bf16.mxu0 0
        %515 = vmatpush1.bf16.msra.mxu0 0
        %516 = vmatprep.subr.bf16.mxu0 0
        %517 = vmatpush1.bf16.msra.mxu0 0
        %518 = vmatprep.subr.bf16.mxu0 0
        %519 = vmatpush1.bf16.msra.mxu0 0
        %520 = vmatprep.subr.bf16.mxu0 0
        %521 = vmatpush1.bf16.msra.mxu0 %v504
        %522 = vmatprep.subr.bf16.mxu0 0
        %523 = vmatpush2.bf16.msra.mxu0 0
        %524 = vmatprep.subr.bf16.mxu0 0
        %525 = vmatpush2.bf16.msra.mxu0 0
        %526 = vmatprep.subr.bf16.mxu0 0
        %527 = vmatpush2.bf16.msra.mxu0 0
        %528 = vmatprep.subr.bf16.mxu0 0
        %529 = vmatpush2.bf16.msra.mxu0 0
        %530 = vmatprep.subr.bf16.mxu0 0
        %531 = vmatpush2.bf16.msra.mxu0 0
        %532 = vmatprep.subr.bf16.mxu0 0
        %533 = vmatpush2.bf16.msra.mxu0 0
        %534 = vmatprep.subr.bf16.mxu0 0
        %535 = vmatpush2.bf16.msra.mxu0 0
        %536 = vmatprep.subr.bf16.mxu0 0
        %537 = vmatpush2.bf16.msra.mxu0 0
        %538 = vmatprep.mubr.bf16.mxu0 0
        %539 = vmatmul.mubr.bf16.gmra.mxu0 %v501
        %v540 = vpop.f32.mrf.mxu0
        %v541 = vadd.f32 0.0, %v540
        %v542 = vpop.f32.mrf.mxu0
        %v543 = vpop.f32.mrf.mxu0
        %v544 = vpop.f32.mrf.mxu0
        %545 = vdwg.mxu0
        %v546 = vadd.f32 %v477, %v541
        %v547 = vld [vmem:[%s335] sm:$0xf]
        %s548 = scalar_lea.vmem %s3, 12
        %v549 = vld [vmem:[%s548] sm:$0xf]
        %v552 = vunpack.c.l.s4 1983009808
        %v553 = vunpack.c.0.s8 %v552
        %v554 = vlaneseq
        %v555 = vshrl.u32 %v554, 7
        %v556 = vsub.s32 %v553, %v555
        %v557 = vrot.slane %v547, %v556
        %v558 = vcombine.high %v557, %v557
        %559 = vrot.lane.b32.xlu0 %v557, 118
        %v560 = vpop.permute.xlu0 %559
        %561 = vrot.lane.b32.xlu0 %v558, 118
        %v562 = vpop.permute.xlu0 %561
        %vm563 = vcmask 965632
        %v564 = vsel %vm563, %v560, %v562
        %v566 = vsel %vm385, %v549, 0
        %v569 = vand.u32 %v564, %v392
        %571 = vmatprep.subr.bf16.mxu0 0
        %572 = vmatpush1.bf16.msra.mxu0 0
        %573 = vmatprep.subr.bf16.mxu0 0
        %574 = vmatpush1.bf16.msra.mxu0 0
        %575 = vmatprep.subr.bf16.mxu0 0
        %576 = vmatpush1.bf16.msra.mxu0 0
        %577 = vmatprep.subr.bf16.mxu0 0
        %578 = vmatpush1.bf16.msra.mxu0 0
        %579 = vmatprep.subr.bf16.mxu0 0
        %580 = vmatpush1.bf16.msra.mxu0 0
        %581 = vmatprep.subr.bf16.mxu0 0
        %582 = vmatpush1.bf16.msra.mxu0 0
        %583 = vmatprep.subr.bf16.mxu0 0
        %584 = vmatpush1.bf16.msra.mxu0 0
        %585 = vmatprep.subr.bf16.mxu0 0
        %586 = vmatpush1.bf16.msra.mxu0 %v569
        %587 = vmatprep.subr.bf16.mxu0 0
        %588 = vmatpush2.bf16.msra.mxu0 0
        %589 = vmatprep.subr.bf16.mxu0 0
        %590 = vmatpush2.bf16.msra.mxu0 0
        %591 = vmatprep.subr.bf16.mxu0 0
        %592 = vmatpush2.bf16.msra.mxu0 0
        %593 = vmatprep.subr.bf16.mxu0 0
        %594 = vmatpush2.bf16.msra.mxu0 0
        %595 = vmatprep.subr.bf16.mxu0 0
        %596 = vmatpush2.bf16.msra.mxu0 0
        %597 = vmatprep.subr.bf16.mxu0 0
        %598 = vmatpush2.bf16.msra.mxu0 0
        %599 = vmatprep.subr.bf16.mxu0 0
        %600 = vmatpush2.bf16.msra.mxu0 0
        %601 = vmatprep.subr.bf16.mxu0 0
        %602 = vmatpush2.bf16.msra.mxu0 0
        %603 = vmatprep.mubr.bf16.mxu0 0
        %604 = vmatmul.mubr.bf16.gmra.mxu0 %v566
        %v605 = vpop.f32.mrf.mxu0
        %v606 = vadd.f32 0.0, %v605
        %v607 = vpop.f32.mrf.mxu0
        %v608 = vpop.f32.mrf.mxu0
        %v609 = vpop.f32.mrf.mxu0
        %610 = vdwg.mxu0
        %v611 = vadd.f32 %v546, %v606
        %v612 = vld [vmem:[%s335] sm:$0xf]
        %s613 = scalar_lea.vmem %s3, 16
        %v614 = vld [vmem:[%s613] sm:$0xf]
        %v617 = vunpack.c.l.s4 1983009808
        %v618 = vunpack.c.0.s8 %v617
        %v619 = vlaneseq
        %v620 = vshrl.u32 %v619, 7
        %v621 = vsub.s32 %v618, %v620
        %v622 = vrot.slane %v612, %v621
        %v623 = vcombine.high %v622, %v622
        %624 = vrot.lane.b32.xlu0 %v622, 117
        %v625 = vpop.permute.xlu0 %624
        %626 = vrot.lane.b32.xlu0 %v623, 117
        %v627 = vpop.permute.xlu0 %626
        %vm628 = vcmask 957440
        %v629 = vsel %vm628, %v625, %v627
        %v631 = vsel %vm385, %v614, 0
        %v634 = vand.u32 %v629, %v392
        %636 = vmatprep.subr.bf16.mxu0 0
        %637 = vmatpush1.bf16.msra.mxu0 0
        %638 = vmatprep.subr.bf16.mxu0 0
        %639 = vmatpush1.bf16.msra.mxu0 0
        %640 = vmatprep.subr.bf16.mxu0 0
        %641 = vmatpush1.bf16.msra.mxu0 0
        %642 = vmatprep.subr.bf16.mxu0 0
        %643 = vmatpush1.bf16.msra.mxu0 0
        %644 = vmatprep.subr.bf16.mxu0 0
        %645 = vmatpush1.bf16.msra.mxu0 0
        %646 = vmatprep.subr.bf16.mxu0 0
        %647 = vmatpush1.bf16.msra.mxu0 0
        %648 = vmatprep.subr.bf16.mxu0 0
        %649 = vmatpush1.bf16.msra.mxu0 0
        %650 = vmatprep.subr.bf16.mxu0 0
        %651 = vmatpush1.bf16.msra.mxu0 %v634
        %652 = vmatprep.subr.bf16.mxu0 0
        %653 = vmatpush2.bf16.msra.mxu0 0
        %654 = vmatprep.subr.bf16.mxu0 0
        %655 = vmatpush2.bf16.msra.mxu0 0
        %656 = vmatprep.subr.bf16.mxu0 0
        %657 = vmatpush2.bf16.msra.mxu0 0
        %658 = vmatprep.subr.bf16.mxu0 0
        %659 = vmatpush2.bf16.msra.mxu0 0
        %660 = vmatprep.subr.bf16.mxu0 0
        %661 = vmatpush2.bf16.msra.mxu0 0
        %662 = vmatprep.subr.bf16.mxu0 0
        %663 = vmatpush2.bf16.msra.mxu0 0
        %664 = vmatprep.subr.bf16.mxu0 0
        %665 = vmatpush2.bf16.msra.mxu0 0
        %666 = vmatprep.subr.bf16.mxu0 0
        %667 = vmatpush2.bf16.msra.mxu0 0
        %668 = vmatprep.mubr.bf16.mxu0 0
        %669 = vmatmul.mubr.bf16.gmra.mxu0 %v631
        %v670 = vpop.f32.mrf.mxu0
        %v671 = vadd.f32 0.0, %v670
        %v672 = vpop.f32.mrf.mxu0
        %v673 = vpop.f32.mrf.mxu0
        %v674 = vpop.f32.mrf.mxu0
        %675 = vdwg.mxu0
        %v676 = vadd.f32 %v611, %v671
        %v677 = vld [vmem:[%s335] sm:$0xf]
        %s678 = scalar_lea.vmem %s3, 20
        %v679 = vld [vmem:[%s678] sm:$0xf]
        %v682 = vunpack.c.l.s4 1983009808
        %v683 = vunpack.c.0.s8 %v682
        %v684 = vlaneseq
        %v685 = vshrl.u32 %v684, 7
        %v686 = vsub.s32 %v683, %v685
        %v687 = vrot.slane %v677, %v686
        %v688 = vcombine.high %v687, %v687
        %689 = vrot.lane.b32.xlu0 %v687, 116
        %v690 = vpop.permute.xlu0 %689
        %691 = vrot.lane.b32.xlu0 %v688, 116
        %v692 = vpop.permute.xlu0 %691
        %vm693 = vcmask 949248
        %v694 = vsel %vm693, %v690, %v692
        %v696 = vsel %vm385, %v679, 0
        %v699 = vand.u32 %v694, %v392
        %701 = vmatprep.subr.bf16.mxu0 0
        %702 = vmatpush1.bf16.msra.mxu0 0
        %703 = vmatprep.subr.bf16.mxu0 0
        %704 = vmatpush1.bf16.msra.mxu0 0
        %705 = vmatprep.subr.bf16.mxu0 0
        %706 = vmatpush1.bf16.msra.mxu0 0
        %707 = vmatprep.subr.bf16.mxu0 0
        %708 = vmatpush1.bf16.msra.mxu0 0
        %709 = vmatprep.subr.bf16.mxu0 0
        %710 = vmatpush1.bf16.msra.mxu0 0
        %711 = vmatprep.subr.bf16.mxu0 0
        %712 = vmatpush1.bf16.msra.mxu0 0
        %713 = vmatprep.subr.bf16.mxu0 0
        %714 = vmatpush1.bf16.msra.mxu0 0
        %715 = vmatprep.subr.bf16.mxu0 0
        %716 = vmatpush1.bf16.msra.mxu0 %v699
        %717 = vmatprep.subr.bf16.mxu0 0
        %718 = vmatpush2.bf16.msra.mxu0 0
        %719 = vmatprep.subr.bf16.mxu0 0
        %720 = vmatpush2.bf16.msra.mxu0 0
        %721 = vmatprep.subr.bf16.mxu0 0
        %722 = vmatpush2.bf16.msra.mxu0 0
        %723 = vmatprep.subr.bf16.mxu0 0
        %724 = vmatpush2.bf16.msra.mxu0 0
        %725 = vmatprep.subr.bf16.mxu0 0
        %726 = vmatpush2.bf16.msra.mxu0 0
        %727 = vmatprep.subr.bf16.mxu0 0
        %728 = vmatpush2.bf16.msra.mxu0 0
        %729 = vmatprep.subr.bf16.mxu0 0
        %730 = vmatpush2.bf16.msra.mxu0 0
        %731 = vmatprep.subr.bf16.mxu0 0
        %732 = vmatpush2.bf16.msra.mxu0 0
        %733 = vmatprep.mubr.bf16.mxu0 0
        %734 = vmatmul.mubr.bf16.gmra.mxu0 %v696
        %v735 = vpop.f32.mrf.mxu0
        %v736 = vadd.f32 0.0, %v735
        %v737 = vpop.f32.mrf.mxu0
        %v738 = vpop.f32.mrf.mxu0
        %v739 = vpop.f32.mrf.mxu0
        %740 = vdwg.mxu0
        %v741 = vadd.f32 %v676, %v736
        %v742 = vld [vmem:[%s335] sm:$0xf]
        %s743 = scalar_lea.vmem %s3, 24
        %v744 = vld [vmem:[%s743] sm:$0xf]
        %v747 = vunpack.c.l.s4 1983009808
        %v748 = vunpack.c.0.s8 %v747
        %v749 = vlaneseq
        %v750 = vshrl.u32 %v749, 7
        %v751 = vsub.s32 %v748, %v750
        %v752 = vrot.slane %v742, %v751
        %v753 = vcombine.high %v752, %v752
        %754 = vrot.lane.b32.xlu0 %v752, 108
        %v755 = vpop.permute.xlu0 %754
        %756 = vrot.lane.b32.xlu0 %v753, 108
        %v757 = vpop.permute.xlu0 %756
        %vm758 = vcmask 883712
        %v759 = vsel %vm758, %v755, %v757
        %v761 = vsel %vm385, %v744, 0
        %v764 = vand.u32 %v759, %v392
        %766 = vmatprep.subr.bf16.mxu0 0
        %767 = vmatpush1.bf16.msra.mxu0 0
        %768 = vmatprep.subr.bf16.mxu0 0
        %769 = vmatpush1.bf16.msra.mxu0 0
        %770 = vmatprep.subr.bf16.mxu0 0
        %771 = vmatpush1.bf16.msra.mxu0 0
        %772 = vmatprep.subr.bf16.mxu0 0
        %773 = vmatpush1.bf16.msra.mxu0 0
        %774 = vmatprep.subr.bf16.mxu0 0
        %775 = vmatpush1.bf16.msra.mxu0 0
        %776 = vmatprep.subr.bf16.mxu0 0
        %777 = vmatpush1.bf16.msra.mxu0 0
        %778 = vmatprep.subr.bf16.mxu0 0
        %779 = vmatpush1.bf16.msra.mxu0 0
        %780 = vmatprep.subr.bf16.mxu0 0
        %781 = vmatpush1.bf16.msra.mxu0 %v764
        %782 = vmatprep.subr.bf16.mxu0 0
        %783 = vmatpush2.bf16.msra.mxu0 0
        %784 = vmatprep.subr.bf16.mxu0 0
        %785 = vmatpush2.bf16.msra.mxu0 0
        %786 = vmatprep.subr.bf16.mxu0 0
        %787 = vmatpush2.bf16.msra.mxu0 0
        %788 = vmatprep.subr.bf16.mxu0 0
        %789 = vmatpush2.bf16.msra.mxu0 0
        %790 = vmatprep.subr.bf16.mxu0 0
        %791 = vmatpush2.bf16.msra.mxu0 0
        %792 = vmatprep.subr.bf16.mxu0 0
        %793 = vmatpush2.bf16.msra.mxu0 0
        %794 = vmatprep.subr.bf16.mxu0 0
        %795 = vmatpush2.bf16.msra.mxu0 0
        %796 = vmatprep.subr.bf16.mxu0 0
        %797 = vmatpush2.bf16.msra.mxu0 0
        %798 = vmatprep.mubr.bf16.mxu0 0
        %799 = vmatmul.mubr.bf16.gmra.mxu0 %v761
        %v800 = vpop.f32.mrf.mxu0
        %v801 = vadd.f32 0.0, %v800
        %v802 = vpop.f32.mrf.mxu0
        %v803 = vpop.f32.mrf.mxu0
        %v804 = vpop.f32.mrf.mxu0
        %805 = vdwg.mxu0
        %v806 = vadd.f32 %v741, %v801
        %v807 = vld [vmem:[%s335] sm:$0xf]
        %s808 = scalar_lea.vmem %s3, 28
        %v809 = vld [vmem:[%s808] sm:$0xf]
        %v812 = vunpack.c.l.s4 1983009808
        %v813 = vunpack.c.0.s8 %v812
        %v814 = vlaneseq
        %v815 = vshrl.u32 %v814, 7
        %v816 = vsub.s32 %v813, %v815
        %v817 = vrot.slane %v807, %v816
        %v818 = vcombine.high %v817, %v817
        %819 = vrot.lane.b32.xlu0 %v817, 107
        %v820 = vpop.permute.xlu0 %819
        %821 = vrot.lane.b32.xlu0 %v818, 107
        %v822 = vpop.permute.xlu0 %821
        %vm823 = vcmask 875520
        %v824 = vsel %vm823, %v820, %v822
        %v826 = vsel %vm385, %v809, 0
        %v829 = vand.u32 %v824, %v392
        %831 = vmatprep.subr.bf16.mxu0 0
        %832 = vmatpush1.bf16.msra.mxu0 0
        %833 = vmatprep.subr.bf16.mxu0 0
        %834 = vmatpush1.bf16.msra.mxu0 0
        %835 = vmatprep.subr.bf16.mxu0 0
        %836 = vmatpush1.bf16.msra.mxu0 0
        %837 = vmatprep.subr.bf16.mxu0 0
        %838 = vmatpush1.bf16.msra.mxu0 0
        %839 = vmatprep.subr.bf16.mxu0 0
        %840 = vmatpush1.bf16.msra.mxu0 0
        %841 = vmatprep.subr.bf16.mxu0 0
        %842 = vmatpush1.bf16.msra.mxu0 0
        %843 = vmatprep.subr.bf16.mxu0 0
        %844 = vmatpush1.bf16.msra.mxu0 0
        %845 = vmatprep.subr.bf16.mxu0 0
        %846 = vmatpush1.bf16.msra.mxu0 %v829
        %847 = vmatprep.subr.bf16.mxu0 0
        %848 = vmatpush2.bf16.msra.mxu0 0
        %849 = vmatprep.subr.bf16.mxu0 0
        %850 = vmatpush2.bf16.msra.mxu0 0
        %851 = vmatprep.subr.bf16.mxu0 0
        %852 = vmatpush2.bf16.msra.mxu0 0
        %853 = vmatprep.subr.bf16.mxu0 0
        %854 = vmatpush2.bf16.msra.mxu0 0
        %855 = vmatprep.subr.bf16.mxu0 0
        %856 = vmatpush2.bf16.msra.mxu0 0
        %857 = vmatprep.subr.bf16.mxu0 0
        %858 = vmatpush2.bf16.msra.mxu0 0
        %859 = vmatprep.subr.bf16.mxu0 0
        %860 = vmatpush2.bf16.msra.mxu0 0
        %861 = vmatprep.subr.bf16.mxu0 0
        %862 = vmatpush2.bf16.msra.mxu0 0
        %863 = vmatprep.mubr.bf16.mxu0 0
        %864 = vmatmul.mubr.bf16.gmra.mxu0 %v826
        %v865 = vpop.f32.mrf.mxu0
        %v866 = vadd.f32 0.0, %v865
        %v867 = vpop.f32.mrf.mxu0
        %v868 = vpop.f32.mrf.mxu0
        %v869 = vpop.f32.mrf.mxu0
        %870 = vdwg.mxu0
        %v871 = vadd.f32 %v806, %v866
        %v872 = vld [vmem:[%s335] sm:$0xf]
        %s873 = scalar_lea.vmem %s3, 32
        %v874 = vld [vmem:[%s873] sm:$0xf]
        %v877 = vunpack.c.l.s4 1983009808
        %v878 = vunpack.c.0.s8 %v877
        %v879 = vlaneseq
        %v880 = vshrl.u32 %v879, 7
        %v881 = vsub.s32 %v878, %v880
        %v882 = vrot.slane %v872, %v881
        %v883 = vcombine.high %v882, %v882
        %884 = vrot.lane.b32.xlu0 %v882, 106
        %v885 = vpop.permute.xlu0 %884
        %886 = vrot.lane.b32.xlu0 %v883, 106
        %v887 = vpop.permute.xlu0 %886
        %vm888 = vcmask 867328
        %v889 = vsel %vm888, %v885, %v887
        %v891 = vsel %vm385, %v874, 0
        %v894 = vand.u32 %v889, %v392
        %896 = vmatprep.subr.bf16.mxu0 0
        %897 = vmatpush1.bf16.msra.mxu0 0
        %898 = vmatprep.subr.bf16.mxu0 0
        %899 = vmatpush1.bf16.msra.mxu0 0
        %900 = vmatprep.subr.bf16.mxu0 0
        %901 = vmatpush1.bf16.msra.mxu0 0
        %902 = vmatprep.subr.bf16.mxu0 0
        %903 = vmatpush1.bf16.msra.mxu0 0
        %904 = vmatprep.subr.bf16.mxu0 0
        %905 = vmatpush1.bf16.msra.mxu0 0
        %906 = vmatprep.subr.bf16.mxu0 0
        %907 = vmatpush1.bf16.msra.mxu0 0
        %908 = vmatprep.subr.bf16.mxu0 0
        %909 = vmatpush1.bf16.msra.mxu0 0
        %910 = vmatprep.subr.bf16.mxu0 0
        %911 = vmatpush1.bf16.msra.mxu0 %v894
        %912 = vmatprep.subr.bf16.mxu0 0
        %913 = vmatpush2.bf16.msra.mxu0 0
        %914 = vmatprep.subr.bf16.mxu0 0
        %915 = vmatpush2.bf16.msra.mxu0 0
        %916 = vmatprep.subr.bf16.mxu0 0
        %917 = vmatpush2.bf16.msra.mxu0 0
        %918 = vmatprep.subr.bf16.mxu0 0
        %919 = vmatpush2.bf16.msra.mxu0 0
        %920 = vmatprep.subr.bf16.mxu0 0
        %921 = vmatpush2.bf16.msra.mxu0 0
        %922 = vmatprep.subr.bf16.mxu0 0
        %923 = vmatpush2.bf16.msra.mxu0 0
        %924 = vmatprep.subr.bf16.mxu0 0
        %925 = vmatpush2.bf16.msra.mxu0 0
        %926 = vmatprep.subr.bf16.mxu0 0
        %927 = vmatpush2.bf16.msra.mxu0 0
        %928 = vmatprep.mubr.bf16.mxu0 0
        %929 = vmatmul.mubr.bf16.gmra.mxu0 %v891
        %v930 = vpop.f32.mrf.mxu0
        %v931 = vadd.f32 0.0, %v930
        %v932 = vpop.f32.mrf.mxu0
        %v933 = vpop.f32.mrf.mxu0
        %v934 = vpop.f32.mrf.mxu0
        %935 = vdwg.mxu0
        %v936 = vadd.f32 %v871, %v931
        %v937 = vld [vmem:[%s345] sm:$0x3]
        %s938 = scalar_lea.vmem %s3, 36
        %v939 = vld [vmem:[%s938] sm:$0xf]
        %v941 = vsel %vm385, %v939, 0
        %v944 = vand.u32 %v937, %v392
        %946 = vmatprep.subr.bf16.mxu0 0
        %947 = vmatpush1.bf16.msra.mxu0 0
        %948 = vmatprep.subr.bf16.mxu0 0
        %949 = vmatpush1.bf16.msra.mxu0 0
        %950 = vmatprep.subr.bf16.mxu0 0
        %951 = vmatpush1.bf16.msra.mxu0 0
        %952 = vmatprep.subr.bf16.mxu0 0
        %953 = vmatpush1.bf16.msra.mxu0 0
        %954 = vmatprep.subr.bf16.mxu0 0
        %955 = vmatpush1.bf16.msra.mxu0 0
        %956 = vmatprep.subr.bf16.mxu0 0
        %957 = vmatpush1.bf16.msra.mxu0 0
        %958 = vmatprep.subr.bf16.mxu0 0
        %959 = vmatpush1.bf16.msra.mxu0 0
        %960 = vmatprep.subr.bf16.mxu0 0
        %961 = vmatpush1.bf16.msra.mxu0 %v944
        %962 = vmatprep.subr.bf16.mxu0 0
        %963 = vmatpush2.bf16.msra.mxu0 0
        %964 = vmatprep.subr.bf16.mxu0 0
        %965 = vmatpush2.bf16.msra.mxu0 0
        %966 = vmatprep.subr.bf16.mxu0 0
        %967 = vmatpush2.bf16.msra.mxu0 0
        %968 = vmatprep.subr.bf16.mxu0 0
        %969 = vmatpush2.bf16.msra.mxu0 0
        %970 = vmatprep.subr.bf16.mxu0 0
        %971 = vmatpush2.bf16.msra.mxu0 0
        %972 = vmatprep.subr.bf16.mxu0 0
        %973 = vmatpush2.bf16.msra.mxu0 0
        %974 = vmatprep.subr.bf16.mxu0 0
        %975 = vmatpush2.bf16.msra.mxu0 0
        %976 = vmatprep.subr.bf16.mxu0 0
        %977 = vmatpush2.bf16.msra.mxu0 0
        %978 = vmatprep.mubr.bf16.mxu0 0
        %979 = vmatmul.mubr.bf16.gmra.mxu0 %v941
        %v980 = vpop.f32.mrf.mxu0
        %v981 = vadd.f32 0.0, %v980
        %v982 = vpop.f32.mrf.mxu0
        %v983 = vpop.f32.mrf.mxu0
        %v984 = vpop.f32.mrf.mxu0
        %985 = vdwg.mxu0
        %v986 = vadd.f32 %v936, %v981
        %v987 = vld [vmem:[%s345] sm:$0xf]
        %s988 = scalar_lea.vmem %s3, 40
        %v989 = vld [vmem:[%s988] sm:$0xf]
        %v992 = vunpack.c.l.s4 1983009808
        %v993 = vunpack.c.0.s8 %v992
        %v994 = vlaneseq
        %v995 = vshrl.u32 %v994, 7
        %v996 = vsub.s32 %v993, %v995
        %v997 = vrot.slane %v987, %v996
        %v998 = vcombine.high %v997, %v997
        %999 = vrot.lane.b32.xlu0 %v997, 127
        %v1000 = vpop.permute.xlu0 %999
        %1001 = vrot.lane.b32.xlu0 %v998, 127
        %v1002 = vpop.permute.xlu0 %1001
        %v1003 = vsel %vm383, %v1000, %v1002
        %v1005 = vsel %vm385, %v989, 0
        %v1008 = vand.u32 %v1003, %v392
        %1010 = vmatprep.subr.bf16.mxu0 0
        %1011 = vmatpush1.bf16.msra.mxu0 0
        %1012 = vmatprep.subr.bf16.mxu0 0
        %1013 = vmatpush1.bf16.msra.mxu0 0
        %1014 = vmatprep.subr.bf16.mxu0 0
        %1015 = vmatpush1.bf16.msra.mxu0 0
        %1016 = vmatprep.subr.bf16.mxu0 0
        %1017 = vmatpush1.bf16.msra.mxu0 0
        %1018 = vmatprep.subr.bf16.mxu0 0
        %1019 = vmatpush1.bf16.msra.mxu0 0
        %1020 = vmatprep.subr.bf16.mxu0 0
        %1021 = vmatpush1.bf16.msra.mxu0 0
        %1022 = vmatprep.subr.bf16.mxu0 0
        %1023 = vmatpush1.bf16.msra.mxu0 0
        %1024 = vmatprep.subr.bf16.mxu0 0
        %1025 = vmatpush1.bf16.msra.mxu0 %v1008
        %1026 = vmatprep.subr.bf16.mxu0 0
        %1027 = vmatpush2.bf16.msra.mxu0 0
        %1028 = vmatprep.subr.bf16.mxu0 0
        %1029 = vmatpush2.bf16.msra.mxu0 0
        %1030 = vmatprep.subr.bf16.mxu0 0
        %1031 = vmatpush2.bf16.msra.mxu0 0
        %1032 = vmatprep.subr.bf16.mxu0 0
        %1033 = vmatpush2.bf16.msra.mxu0 0
        %1034 = vmatprep.subr.bf16.mxu0 0
        %1035 = vmatpush2.bf16.msra.mxu0 0
        %1036 = vmatprep.subr.bf16.mxu0 0
        %1037 = vmatpush2.bf16.msra.mxu0 0
        %1038 = vmatprep.subr.bf16.mxu0 0
        %1039 = vmatpush2.bf16.msra.mxu0 0
        %1040 = vmatprep.subr.bf16.mxu0 0
        %1041 = vmatpush2.bf16.msra.mxu0 0
        %1042 = vmatprep.mubr.bf16.mxu0 0
        %1043 = vmatmul.mubr.bf16.gmra.mxu0 %v1005
        %v1044 = vpop.f32.mrf.mxu0
        %v1045 = vadd.f32 0.0, %v1044
        %v1046 = vpop.f32.mrf.mxu0
        %v1047 = vpop.f32.mrf.mxu0
        %v1048 = vpop.f32.mrf.mxu0
        %1049 = vdwg.mxu0
        %v1050 = vadd.f32 %v986, %v1045
        %v1051 = vld [vmem:[%s345] sm:$0xf]
        %s1052 = scalar_lea.vmem %s3, 44
        %v1053 = vld [vmem:[%s1052] sm:$0xf]
        %v1056 = vunpack.c.l.s4 1983009808
        %v1057 = vunpack.c.0.s8 %v1056
        %v1058 = vlaneseq
        %v1059 = vshrl.u32 %v1058, 7
        %v1060 = vsub.s32 %v1057, %v1059
        %v1061 = vrot.slane %v1051, %v1060
        %v1062 = vcombine.high %v1061, %v1061
        %1063 = vrot.lane.b32.xlu0 %v1061, 126
        %v1064 = vpop.permute.xlu0 %1063
        %1065 = vrot.lane.b32.xlu0 %v1062, 126
        %v1066 = vpop.permute.xlu0 %1065
        %v1067 = vsel %vm498, %v1064, %v1066
        %v1069 = vsel %vm385, %v1053, 0
        %v1072 = vand.u32 %v1067, %v392
        %1074 = vmatprep.subr.bf16.mxu0 0
        %1075 = vmatpush1.bf16.msra.mxu0 0
        %1076 = vmatprep.subr.bf16.mxu0 0
        %1077 = vmatpush1.bf16.msra.mxu0 0
        %1078 = vmatprep.subr.bf16.mxu0 0
        %1079 = vmatpush1.bf16.msra.mxu0 0
        %1080 = vmatprep.subr.bf16.mxu0 0
        %1081 = vmatpush1.bf16.msra.mxu0 0
        %1082 = vmatprep.subr.bf16.mxu0 0
        %1083 = vmatpush1.bf16.msra.mxu0 0
        %1084 = vmatprep.subr.bf16.mxu0 0
        %1085 = vmatpush1.bf16.msra.mxu0 0
        %1086 = vmatprep.subr.bf16.mxu0 0
        %1087 = vmatpush1.bf16.msra.mxu0 0
        %1088 = vmatprep.subr.bf16.mxu0 0
        %1089 = vmatpush1.bf16.msra.mxu0 %v1072
        %1090 = vmatprep.subr.bf16.mxu0 0
        %1091 = vmatpush2.bf16.msra.mxu0 0
        %1092 = vmatprep.subr.bf16.mxu0 0
        %1093 = vmatpush2.bf16.msra.mxu0 0
        %1094 = vmatprep.subr.bf16.mxu0 0
        %1095 = vmatpush2.bf16.msra.mxu0 0
        %1096 = vmatprep.subr.bf16.mxu0 0
        %1097 = vmatpush2.bf16.msra.mxu0 0
        %1098 = vmatprep.subr.bf16.mxu0 0
        %1099 = vmatpush2.bf16.msra.mxu0 0
        %1100 = vmatprep.subr.bf16.mxu0 0
        %1101 = vmatpush2.bf16.msra.mxu0 0
        %1102 = vmatprep.subr.bf16.mxu0 0
        %1103 = vmatpush2.bf16.msra.mxu0 0
        %1104 = vmatprep.subr.bf16.mxu0 0
        %1105 = vmatpush2.bf16.msra.mxu0 0
        %1106 = vmatprep.mubr.bf16.mxu0 0
        %1107 = vmatmul.mubr.bf16.gmra.mxu0 %v1069
        %v1108 = vpop.f32.mrf.mxu0
        %v1109 = vadd.f32 0.0, %v1108
        %v1110 = vpop.f32.mrf.mxu0
        %v1111 = vpop.f32.mrf.mxu0
        %v1112 = vpop.f32.mrf.mxu0
        %1113 = vdwg.mxu0
        %v1114 = vadd.f32 %v1050, %v1109
        %v1115 = vld [vmem:[%s345] sm:$0xf]
        %s1116 = scalar_lea.vmem %s3, 48
        %v1117 = vld [vmem:[%s1116] sm:$0xf]
        %v1120 = vunpack.c.l.s4 1983009808
        %v1121 = vunpack.c.0.s8 %v1120
        %v1122 = vlaneseq
        %v1123 = vshrl.u32 %v1122, 7
        %v1124 = vsub.s32 %v1121, %v1123
        %v1125 = vrot.slane %v1115, %v1124
        %v1126 = vcombine.high %v1125, %v1125
        %1127 = vrot.lane.b32.xlu0 %v1125, 118
        %v1128 = vpop.permute.xlu0 %1127
        %1129 = vrot.lane.b32.xlu0 %v1126, 118
        %v1130 = vpop.permute.xlu0 %1129
        %v1131 = vsel %vm563, %v1128, %v1130
        %v1133 = vsel %vm385, %v1117, 0
        %v1136 = vand.u32 %v1131, %v392
        %1138 = vmatprep.subr.bf16.mxu0 0
        %1139 = vmatpush1.bf16.msra.mxu0 0
        %1140 = vmatprep.subr.bf16.mxu0 0
        %1141 = vmatpush1.bf16.msra.mxu0 0
        %1142 = vmatprep.subr.bf16.mxu0 0
        %1143 = vmatpush1.bf16.msra.mxu0 0
        %1144 = vmatprep.subr.bf16.mxu0 0
        %1145 = vmatpush1.bf16.msra.mxu0 0
        %1146 = vmatprep.subr.bf16.mxu0 0
        %1147 = vmatpush1.bf16.msra.mxu0 0
        %1148 = vmatprep.subr.bf16.mxu0 0
        %1149 = vmatpush1.bf16.msra.mxu0 0
        %1150 = vmatprep.subr.bf16.mxu0 0
        %1151 = vmatpush1.bf16.msra.mxu0 0
        %1152 = vmatprep.subr.bf16.mxu0 0
        %1153 = vmatpush1.bf16.msra.mxu0 %v1136
        %1154 = vmatprep.subr.bf16.mxu0 0
        %1155 = vmatpush2.bf16.msra.mxu0 0
        %1156 = vmatprep.subr.bf16.mxu0 0
        %1157 = vmatpush2.bf16.msra.mxu0 0
        %1158 = vmatprep.subr.bf16.mxu0 0
        %1159 = vmatpush2.bf16.msra.mxu0 0
        %1160 = vmatprep.subr.bf16.mxu0 0
        %1161 = vmatpush2.bf16.msra.mxu0 0
        %1162 = vmatprep.subr.bf16.mxu0 0
        %1163 = vmatpush2.bf16.msra.mxu0 0
        %1164 = vmatprep.subr.bf16.mxu0 0
        %1165 = vmatpush2.bf16.msra.mxu0 0
        %1166 = vmatprep.subr.bf16.mxu0 0
        %1167 = vmatpush2.bf16.msra.mxu0 0
        %1168 = vmatprep.subr.bf16.mxu0 0
        %1169 = vmatpush2.bf16.msra.mxu0 0
        %1170 = vmatprep.mubr.bf16.mxu0 0
        %1171 = vmatmul.mubr.bf16.gmra.mxu0 %v1133
        %v1172 = vpop.f32.mrf.mxu0
        %v1173 = vadd.f32 0.0, %v1172
        %v1174 = vpop.f32.mrf.mxu0
        %v1175 = vpop.f32.mrf.mxu0
        %v1176 = vpop.f32.mrf.mxu0
        %1177 = vdwg.mxu0
        %v1178 = vadd.f32 %v1114, %v1173
        %v1179 = vld [vmem:[%s345] sm:$0xf]
        %s1180 = scalar_lea.vmem %s3, 52
        %v1181 = vld [vmem:[%s1180] sm:$0xf]
        %v1184 = vunpack.c.l.s4 1983009808
        %v1185 = vunpack.c.0.s8 %v1184
        %v1186 = vlaneseq
        %v1187 = vshrl.u32 %v1186, 7
        %v1188 = vsub.s32 %v1185, %v1187
        %v1189 = vrot.slane %v1179, %v1188
        %v1190 = vcombine.high %v1189, %v1189
        %1191 = vrot.lane.b32.xlu0 %v1189, 117
        %v1192 = vpop.permute.xlu0 %1191
        %1193 = vrot.lane.b32.xlu0 %v1190, 117
        %v1194 = vpop.permute.xlu0 %1193
        %v1195 = vsel %vm628, %v1192, %v1194
        %v1197 = vsel %vm385, %v1181, 0
        %v1200 = vand.u32 %v1195, %v392
        %1202 = vmatprep.subr.bf16.mxu0 0
        %1203 = vmatpush1.bf16.msra.mxu0 0
        %1204 = vmatprep.subr.bf16.mxu0 0
        %1205 = vmatpush1.bf16.msra.mxu0 0
        %1206 = vmatprep.subr.bf16.mxu0 0
        %1207 = vmatpush1.bf16.msra.mxu0 0
        %1208 = vmatprep.subr.bf16.mxu0 0
        %1209 = vmatpush1.bf16.msra.mxu0 0
        %1210 = vmatprep.subr.bf16.mxu0 0
        %1211 = vmatpush1.bf16.msra.mxu0 0
        %1212 = vmatprep.subr.bf16.mxu0 0
        %1213 = vmatpush1.bf16.msra.mxu0 0
        %1214 = vmatprep.subr.bf16.mxu0 0
        %1215 = vmatpush1.bf16.msra.mxu0 0
        %1216 = vmatprep.subr.bf16.mxu0 0
        %1217 = vmatpush1.bf16.msra.mxu0 %v1200
        %1218 = vmatprep.subr.bf16.mxu0 0
        %1219 = vmatpush2.bf16.msra.mxu0 0
        %1220 = vmatprep.subr.bf16.mxu0 0
        %1221 = vmatpush2.bf16.msra.mxu0 0
        %1222 = vmatprep.subr.bf16.mxu0 0
        %1223 = vmatpush2.bf16.msra.mxu0 0
        %1224 = vmatprep.subr.bf16.mxu0 0
        %1225 = vmatpush2.bf16.msra.mxu0 0
        %1226 = vmatprep.subr.bf16.mxu0 0
        %1227 = vmatpush2.bf16.msra.mxu0 0
        %1228 = vmatprep.subr.bf16.mxu0 0
        %1229 = vmatpush2.bf16.msra.mxu0 0
        %1230 = vmatprep.subr.bf16.mxu0 0
        %1231 = vmatpush2.bf16.msra.mxu0 0
        %1232 = vmatprep.subr.bf16.mxu0 0
        %1233 = vmatpush2.bf16.msra.mxu0 0
        %1234 = vmatprep.mubr.bf16.mxu0 0
        %1235 = vmatmul.mubr.bf16.gmra.mxu0 %v1197
        %v1236 = vpop.f32.mrf.mxu0
        %v1237 = vadd.f32 0.0, %v1236
        %v1238 = vpop.f32.mrf.mxu0
        %v1239 = vpop.f32.mrf.mxu0
        %v1240 = vpop.f32.mrf.mxu0
        %1241 = vdwg.mxu0
        %v1242 = vadd.f32 %v1178, %v1237
        %v1243 = vld [vmem:[%s345] sm:$0xf]
        %s1244 = scalar_lea.vmem %s3, 56
        %v1245 = vld [vmem:[%s1244] sm:$0xf]
        %v1248 = vunpack.c.l.s4 1983009808
        %v1249 = vunpack.c.0.s8 %v1248
        %v1250 = vlaneseq
        %v1251 = vshrl.u32 %v1250, 7
        %v1252 = vsub.s32 %v1249, %v1251
        %v1253 = vrot.slane %v1243, %v1252
        %v1254 = vcombine.high %v1253, %v1253
        %1255 = vrot.lane.b32.xlu0 %v1253, 116
        %v1256 = vpop.permute.xlu0 %1255
        %1257 = vrot.lane.b32.xlu0 %v1254, 116
        %v1258 = vpop.permute.xlu0 %1257
        %v1259 = vsel %vm693, %v1256, %v1258
        %v1261 = vsel %vm385, %v1245, 0
        %v1264 = vand.u32 %v1259, %v392
        %1266 = vmatprep.subr.bf16.mxu0 0
        %1267 = vmatpush1.bf16.msra.mxu0 0
        %1268 = vmatprep.subr.bf16.mxu0 0
        %1269 = vmatpush1.bf16.msra.mxu0 0
        %1270 = vmatprep.subr.bf16.mxu0 0
        %1271 = vmatpush1.bf16.msra.mxu0 0
        %1272 = vmatprep.subr.bf16.mxu0 0
        %1273 = vmatpush1.bf16.msra.mxu0 0
        %1274 = vmatprep.subr.bf16.mxu0 0
        %1275 = vmatpush1.bf16.msra.mxu0 0
        %1276 = vmatprep.subr.bf16.mxu0 0
        %1277 = vmatpush1.bf16.msra.mxu0 0
        %1278 = vmatprep.subr.bf16.mxu0 0
        %1279 = vmatpush1.bf16.msra.mxu0 0
        %1280 = vmatprep.subr.bf16.mxu0 0
        %1281 = vmatpush1.bf16.msra.mxu0 %v1264
        %1282 = vmatprep.subr.bf16.mxu0 0
        %1283 = vmatpush2.bf16.msra.mxu0 0
        %1284 = vmatprep.subr.bf16.mxu0 0
        %1285 = vmatpush2.bf16.msra.mxu0 0
        %1286 = vmatprep.subr.bf16.mxu0 0
        %1287 = vmatpush2.bf16.msra.mxu0 0
        %1288 = vmatprep.subr.bf16.mxu0 0
        %1289 = vmatpush2.bf16.msra.mxu0 0
        %1290 = vmatprep.subr.bf16.mxu0 0
        %1291 = vmatpush2.bf16.msra.mxu0 0
        %1292 = vmatprep.subr.bf16.mxu0 0
        %1293 = vmatpush2.bf16.msra.mxu0 0
        %1294 = vmatprep.subr.bf16.mxu0 0
        %1295 = vmatpush2.bf16.msra.mxu0 0
        %1296 = vmatprep.subr.bf16.mxu0 0
        %1297 = vmatpush2.bf16.msra.mxu0 0
        %1298 = vmatprep.mubr.bf16.mxu0 0
        %1299 = vmatmul.mubr.bf16.gmra.mxu0 %v1261
        %v1300 = vpop.f32.mrf.mxu0
        %v1301 = vadd.f32 0.0, %v1300
        %v1302 = vpop.f32.mrf.mxu0
        %v1303 = vpop.f32.mrf.mxu0
        %v1304 = vpop.f32.mrf.mxu0
        %1305 = vdwg.mxu0
        %v1306 = vadd.f32 %v1242, %v1301
        %v1307 = vld [vmem:[%s345] sm:$0xf]
        %s1308 = scalar_lea.vmem %s3, 60
        %v1309 = vld [vmem:[%s1308] sm:$0xf]
        %v1312 = vunpack.c.l.s4 1983009808
        %v1313 = vunpack.c.0.s8 %v1312
        %v1314 = vlaneseq
        %v1315 = vshrl.u32 %v1314, 7
        %v1316 = vsub.s32 %v1313, %v1315
        %v1317 = vrot.slane %v1307, %v1316
        %v1318 = vcombine.high %v1317, %v1317
        %1319 = vrot.lane.b32.xlu0 %v1317, 108
        %v1320 = vpop.permute.xlu0 %1319
        %1321 = vrot.lane.b32.xlu0 %v1318, 108
        %v1322 = vpop.permute.xlu0 %1321
        %v1323 = vsel %vm758, %v1320, %v1322
        %v1325 = vsel %vm385, %v1309, 0
        %v1328 = vand.u32 %v1323, %v392
        %1330 = vmatprep.subr.bf16.mxu0 0
        %1331 = vmatpush1.bf16.msra.mxu0 0
        %1332 = vmatprep.subr.bf16.mxu0 0
        %1333 = vmatpush1.bf16.msra.mxu0 0
        %1334 = vmatprep.subr.bf16.mxu0 0
        %1335 = vmatpush1.bf16.msra.mxu0 0
        %1336 = vmatprep.subr.bf16.mxu0 0
        %1337 = vmatpush1.bf16.msra.mxu0 0
        %1338 = vmatprep.subr.bf16.mxu0 0
        %1339 = vmatpush1.bf16.msra.mxu0 0
        %1340 = vmatprep.subr.bf16.mxu0 0
        %1341 = vmatpush1.bf16.msra.mxu0 0
        %1342 = vmatprep.subr.bf16.mxu0 0
        %1343 = vmatpush1.bf16.msra.mxu0 0
        %1344 = vmatprep.subr.bf16.mxu0 0
        %1345 = vmatpush1.bf16.msra.mxu0 %v1328
        %1346 = vmatprep.subr.bf16.mxu0 0
        %1347 = vmatpush2.bf16.msra.mxu0 0
        %1348 = vmatprep.subr.bf16.mxu0 0
        %1349 = vmatpush2.bf16.msra.mxu0 0
        %1350 = vmatprep.subr.bf16.mxu0 0
        %1351 = vmatpush2.bf16.msra.mxu0 0
        %1352 = vmatprep.subr.bf16.mxu0 0
        %1353 = vmatpush2.bf16.msra.mxu0 0
        %1354 = vmatprep.subr.bf16.mxu0 0
        %1355 = vmatpush2.bf16.msra.mxu0 0
        %1356 = vmatprep.subr.bf16.mxu0 0
        %1357 = vmatpush2.bf16.msra.mxu0 0
        %1358 = vmatprep.subr.bf16.mxu0 0
        %1359 = vmatpush2.bf16.msra.mxu0 0
        %1360 = vmatprep.subr.bf16.mxu0 0
        %1361 = vmatpush2.bf16.msra.mxu0 0
        %1362 = vmatprep.mubr.bf16.mxu0 0
        %1363 = vmatmul.mubr.bf16.gmra.mxu0 %v1325
        %v1364 = vpop.f32.mrf.mxu0
        %v1365 = vadd.f32 0.0, %v1364
        %v1366 = vpop.f32.mrf.mxu0
        %v1367 = vpop.f32.mrf.mxu0
        %v1368 = vpop.f32.mrf.mxu0
        %1369 = vdwg.mxu0
        %v1370 = vadd.f32 %v1306, %v1365
        %v1371 = vld [vmem:[%s345] sm:$0xf]
        %s1372 = scalar_lea.vmem %s3, 64
        %v1373 = vld [vmem:[%s1372] sm:$0xf]
        %v1376 = vunpack.c.l.s4 1983009808
        %v1377 = vunpack.c.0.s8 %v1376
        %v1378 = vlaneseq
        %v1379 = vshrl.u32 %v1378, 7
        %v1380 = vsub.s32 %v1377, %v1379
        %v1381 = vrot.slane %v1371, %v1380
        %v1382 = vcombine.high %v1381, %v1381
        %1383 = vrot.lane.b32.xlu0 %v1381, 107
        %v1384 = vpop.permute.xlu0 %1383
        %1385 = vrot.lane.b32.xlu0 %v1382, 107
        %v1386 = vpop.permute.xlu0 %1385
        %v1387 = vsel %vm823, %v1384, %v1386
        %v1389 = vsel %vm385, %v1373, 0
        %v1392 = vand.u32 %v1387, %v392
        %1394 = vmatprep.subr.bf16.mxu0 0
        %1395 = vmatpush1.bf16.msra.mxu0 0
        %1396 = vmatprep.subr.bf16.mxu0 0
        %1397 = vmatpush1.bf16.msra.mxu0 0
        %1398 = vmatprep.subr.bf16.mxu0 0
        %1399 = vmatpush1.bf16.msra.mxu0 0
        %1400 = vmatprep.subr.bf16.mxu0 0
        %1401 = vmatpush1.bf16.msra.mxu0 0
        %1402 = vmatprep.subr.bf16.mxu0 0
        %1403 = vmatpush1.bf16.msra.mxu0 0
        %1404 = vmatprep.subr.bf16.mxu0 0
        %1405 = vmatpush1.bf16.msra.mxu0 0
        %1406 = vmatprep.subr.bf16.mxu0 0
        %1407 = vmatpush1.bf16.msra.mxu0 0
        %1408 = vmatprep.subr.bf16.mxu0 0
        %1409 = vmatpush1.bf16.msra.mxu0 %v1392
        %1410 = vmatprep.subr.bf16.mxu0 0
        %1411 = vmatpush2.bf16.msra.mxu0 0
        %1412 = vmatprep.subr.bf16.mxu0 0
        %1413 = vmatpush2.bf16.msra.mxu0 0
        %1414 = vmatprep.subr.bf16.mxu0 0
        %1415 = vmatpush2.bf16.msra.mxu0 0
        %1416 = vmatprep.subr.bf16.mxu0 0
        %1417 = vmatpush2.bf16.msra.mxu0 0
        %1418 = vmatprep.subr.bf16.mxu0 0
        %1419 = vmatpush2.bf16.msra.mxu0 0
        %1420 = vmatprep.subr.bf16.mxu0 0
        %1421 = vmatpush2.bf16.msra.mxu0 0
        %1422 = vmatprep.subr.bf16.mxu0 0
        %1423 = vmatpush2.bf16.msra.mxu0 0
        %1424 = vmatprep.subr.bf16.mxu0 0
        %1425 = vmatpush2.bf16.msra.mxu0 0
        %1426 = vmatprep.mubr.bf16.mxu0 0
        %1427 = vmatmul.mubr.bf16.gmra.mxu0 %v1389
        %v1428 = vpop.f32.mrf.mxu0
        %v1429 = vadd.f32 0.0, %v1428
        %v1430 = vpop.f32.mrf.mxu0
        %v1431 = vpop.f32.mrf.mxu0
        %v1432 = vpop.f32.mrf.mxu0
        %1433 = vdwg.mxu0
        %v1434 = vadd.f32 %v1370, %v1429
        %v1435 = vld [vmem:[%s345] sm:$0xf]
        %s1436 = scalar_lea.vmem %s3, 68
        %v1437 = vld [vmem:[%s1436] sm:$0xf]
        %v1440 = vunpack.c.l.s4 1983009808
        %v1441 = vunpack.c.0.s8 %v1440
        %v1442 = vlaneseq
        %v1443 = vshrl.u32 %v1442, 7
        %v1444 = vsub.s32 %v1441, %v1443
        %v1445 = vrot.slane %v1435, %v1444
        %v1446 = vcombine.high %v1445, %v1445
        %1447 = vrot.lane.b32.xlu0 %v1445, 106
        %v1448 = vpop.permute.xlu0 %1447
        %1449 = vrot.lane.b32.xlu0 %v1446, 106
        %v1450 = vpop.permute.xlu0 %1449
        %v1451 = vsel %vm888, %v1448, %v1450
        %v1453 = vsel %vm385, %v1437, 0
        %v1456 = vand.u32 %v1451, %v392
        %1458 = vmatprep.subr.bf16.mxu0 0
        %1459 = vmatpush1.bf16.msra.mxu0 0
        %1460 = vmatprep.subr.bf16.mxu0 0
        %1461 = vmatpush1.bf16.msra.mxu0 0
        %1462 = vmatprep.subr.bf16.mxu0 0
        %1463 = vmatpush1.bf16.msra.mxu0 0
        %1464 = vmatprep.subr.bf16.mxu0 0
        %1465 = vmatpush1.bf16.msra.mxu0 0
        %1466 = vmatprep.subr.bf16.mxu0 0
        %1467 = vmatpush1.bf16.msra.mxu0 0
        %1468 = vmatprep.subr.bf16.mxu0 0
        %1469 = vmatpush1.bf16.msra.mxu0 0
        %1470 = vmatprep.subr.bf16.mxu0 0
        %1471 = vmatpush1.bf16.msra.mxu0 0
        %1472 = vmatprep.subr.bf16.mxu0 0
        %1473 = vmatpush1.bf16.msra.mxu0 %v1456
        %1474 = vmatprep.subr.bf16.mxu0 0
        %1475 = vmatpush2.bf16.msra.mxu0 0
        %1476 = vmatprep.subr.bf16.mxu0 0
        %1477 = vmatpush2.bf16.msra.mxu0 0
        %1478 = vmatprep.subr.bf16.mxu0 0
        %1479 = vmatpush2.bf16.msra.mxu0 0
        %1480 = vmatprep.subr.bf16.mxu0 0
        %1481 = vmatpush2.bf16.msra.mxu0 0
        %1482 = vmatprep.subr.bf16.mxu0 0
        %1483 = vmatpush2.bf16.msra.mxu0 0
        %1484 = vmatprep.subr.bf16.mxu0 0
        %1485 = vmatpush2.bf16.msra.mxu0 0
        %1486 = vmatprep.subr.bf16.mxu0 0
        %1487 = vmatpush2.bf16.msra.mxu0 0
        %1488 = vmatprep.subr.bf16.mxu0 0
        %1489 = vmatpush2.bf16.msra.mxu0 0
        %1490 = vmatprep.mubr.bf16.mxu0 0
        %1491 = vmatmul.mubr.bf16.gmra.mxu0 %v1453
        %v1492 = vpop.f32.mrf.mxu0
        %v1493 = vadd.f32 0.0, %v1492
        %v1494 = vpop.f32.mrf.mxu0
        %v1495 = vpop.f32.mrf.mxu0
        %v1496 = vpop.f32.mrf.mxu0
        %1497 = vdwg.mxu0
        %v1498 = vadd.f32 %v1434, %v1493
        %v1499 = vld [vmem:[%s356] sm:$0x3]
        %s1500 = scalar_lea.vmem %s3, 72
        %v1501 = vld [vmem:[%s1500] sm:$0xf]
        %v1503 = vsel %vm385, %v1501, 0
        %v1506 = vand.u32 %v1499, %v392
        %1508 = vmatprep.subr.bf16.mxu0 0
        %1509 = vmatpush1.bf16.msra.mxu0 0
        %1510 = vmatprep.subr.bf16.mxu0 0
        %1511 = vmatpush1.bf16.msra.mxu0 0
        %1512 = vmatprep.subr.bf16.mxu0 0
        %1513 = vmatpush1.bf16.msra.mxu0 0
        %1514 = vmatprep.subr.bf16.mxu0 0
        %1515 = vmatpush1.bf16.msra.mxu0 0
        %1516 = vmatprep.subr.bf16.mxu0 0
        %1517 = vmatpush1.bf16.msra.mxu0 0
        %1518 = vmatprep.subr.bf16.mxu0 0
        %1519 = vmatpush1.bf16.msra.mxu0 0
        %1520 = vmatprep.subr.bf16.mxu0 0
        %1521 = vmatpush1.bf16.msra.mxu0 0
        %1522 = vmatprep.subr.bf16.mxu0 0
        %1523 = vmatpush1.bf16.msra.mxu0 %v1506
        %1524 = vmatprep.subr.bf16.mxu0 0
        %1525 = vmatpush2.bf16.msra.mxu0 0
        %1526 = vmatprep.subr.bf16.mxu0 0
        %1527 = vmatpush2.bf16.msra.mxu0 0
        %1528 = vmatprep.subr.bf16.mxu0 0
        %1529 = vmatpush2.bf16.msra.mxu0 0
        %1530 = vmatprep.subr.bf16.mxu0 0
        %1531 = vmatpush2.bf16.msra.mxu0 0
        %1532 = vmatprep.subr.bf16.mxu0 0
        %1533 = vmatpush2.bf16.msra.mxu0 0
        %1534 = vmatprep.subr.bf16.mxu0 0
        %1535 = vmatpush2.bf16.msra.mxu0 0
        %1536 = vmatprep.subr.bf16.mxu0 0
        %1537 = vmatpush2.bf16.msra.mxu0 0
        %1538 = vmatprep.subr.bf16.mxu0 0
        %1539 = vmatpush2.bf16.msra.mxu0 0
        %1540 = vmatprep.mubr.bf16.mxu0 0
        %1541 = vmatmul.mubr.bf16.gmra.mxu0 %v1503
        %v1542 = vpop.f32.mrf.mxu0
        %v1543 = vadd.f32 0.0, %v1542
        %v1544 = vpop.f32.mrf.mxu0
        %v1545 = vpop.f32.mrf.mxu0
        %v1546 = vpop.f32.mrf.mxu0
        %1547 = vdwg.mxu0
        %v1548 = vadd.f32 %v1498, %v1543
        %v1549 = vld [vmem:[%s356] sm:$0xf]
        %s1550 = scalar_lea.vmem %s3, 76
        %v1551 = vld [vmem:[%s1550] sm:$0xf]
        %v1554 = vunpack.c.l.s4 1983009808
        %v1555 = vunpack.c.0.s8 %v1554
        %v1556 = vlaneseq
        %v1557 = vshrl.u32 %v1556, 7
        %v1558 = vsub.s32 %v1555, %v1557
        %v1559 = vrot.slane %v1549, %v1558
        %v1560 = vcombine.high %v1559, %v1559
        %1561 = vrot.lane.b32.xlu0 %v1559, 127
        %v1562 = vpop.permute.xlu0 %1561
        %1563 = vrot.lane.b32.xlu0 %v1560, 127
        %v1564 = vpop.permute.xlu0 %1563
        %v1565 = vsel %vm383, %v1562, %v1564
        %v1567 = vsel %vm385, %v1551, 0
        %v1570 = vand.u32 %v1565, %v392
        %1572 = vmatprep.subr.bf16.mxu0 0
        %1573 = vmatpush1.bf16.msra.mxu0 0
        %1574 = vmatprep.subr.bf16.mxu0 0
        %1575 = vmatpush1.bf16.msra.mxu0 0
        %1576 = vmatprep.subr.bf16.mxu0 0
        %1577 = vmatpush1.bf16.msra.mxu0 0
        %1578 = vmatprep.subr.bf16.mxu0 0
        %1579 = vmatpush1.bf16.msra.mxu0 0
        %1580 = vmatprep.subr.bf16.mxu0 0
        %1581 = vmatpush1.bf16.msra.mxu0 0
        %1582 = vmatprep.subr.bf16.mxu0 0
        %1583 = vmatpush1.bf16.msra.mxu0 0
        %1584 = vmatprep.subr.bf16.mxu0 0
        %1585 = vmatpush1.bf16.msra.mxu0 0
        %1586 = vmatprep.subr.bf16.mxu0 0
        %1587 = vmatpush1.bf16.msra.mxu0 %v1570
        %1588 = vmatprep.subr.bf16.mxu0 0
        %1589 = vmatpush2.bf16.msra.mxu0 0
        %1590 = vmatprep.subr.bf16.mxu0 0
        %1591 = vmatpush2.bf16.msra.mxu0 0
        %1592 = vmatprep.subr.bf16.mxu0 0
        %1593 = vmatpush2.bf16.msra.mxu0 0
        %1594 = vmatprep.subr.bf16.mxu0 0
        %1595 = vmatpush2.bf16.msra.mxu0 0
        %1596 = vmatprep.subr.bf16.mxu0 0
        %1597 = vmatpush2.bf16.msra.mxu0 0
        %1598 = vmatprep.subr.bf16.mxu0 0
        %1599 = vmatpush2.bf16.msra.mxu0 0
        %1600 = vmatprep.subr.bf16.mxu0 0
        %1601 = vmatpush2.bf16.msra.mxu0 0
        %1602 = vmatprep.subr.bf16.mxu0 0
        %1603 = vmatpush2.bf16.msra.mxu0 0
        %1604 = vmatprep.mubr.bf16.mxu0 0
        %1605 = vmatmul.mubr.bf16.gmra.mxu0 %v1567
        %v1606 = vpop.f32.mrf.mxu0
        %v1607 = vadd.f32 0.0, %v1606
        %v1608 = vpop.f32.mrf.mxu0
        %v1609 = vpop.f32.mrf.mxu0
        %v1610 = vpop.f32.mrf.mxu0
        %1611 = vdwg.mxu0
        %v1612 = vadd.f32 %v1548, %v1607
        %v1613 = vld [vmem:[%s356] sm:$0xf]
        %s1614 = scalar_lea.vmem %s3, 80
        %v1615 = vld [vmem:[%s1614] sm:$0xf]
        %v1618 = vunpack.c.l.s4 1983009808
        %v1619 = vunpack.c.0.s8 %v1618
        %v1620 = vlaneseq
        %v1621 = vshrl.u32 %v1620, 7
        %v1622 = vsub.s32 %v1619, %v1621
        %v1623 = vrot.slane %v1613, %v1622
        %v1624 = vcombine.high %v1623, %v1623
        %1625 = vrot.lane.b32.xlu0 %v1623, 126
        %v1626 = vpop.permute.xlu0 %1625
        %1627 = vrot.lane.b32.xlu0 %v1624, 126
        %v1628 = vpop.permute.xlu0 %1627
        %v1629 = vsel %vm498, %v1626, %v1628
        %v1631 = vsel %vm385, %v1615, 0
        %v1634 = vand.u32 %v1629, %v392
        %1636 = vmatprep.subr.bf16.mxu0 0
        %1637 = vmatpush1.bf16.msra.mxu0 0
        %1638 = vmatprep.subr.bf16.mxu0 0
        %1639 = vmatpush1.bf16.msra.mxu0 0
        %1640 = vmatprep.subr.bf16.mxu0 0
        %1641 = vmatpush1.bf16.msra.mxu0 0
        %1642 = vmatprep.subr.bf16.mxu0 0
        %1643 = vmatpush1.bf16.msra.mxu0 0
        %1644 = vmatprep.subr.bf16.mxu0 0
        %1645 = vmatpush1.bf16.msra.mxu0 0
        %1646 = vmatprep.subr.bf16.mxu0 0
        %1647 = vmatpush1.bf16.msra.mxu0 0
        %1648 = vmatprep.subr.bf16.mxu0 0
        %1649 = vmatpush1.bf16.msra.mxu0 0
        %1650 = vmatprep.subr.bf16.mxu0 0
        %1651 = vmatpush1.bf16.msra.mxu0 %v1634
        %1652 = vmatprep.subr.bf16.mxu0 0
        %1653 = vmatpush2.bf16.msra.mxu0 0
        %1654 = vmatprep.subr.bf16.mxu0 0
        %1655 = vmatpush2.bf16.msra.mxu0 0
        %1656 = vmatprep.subr.bf16.mxu0 0
        %1657 = vmatpush2.bf16.msra.mxu0 0
        %1658 = vmatprep.subr.bf16.mxu0 0
        %1659 = vmatpush2.bf16.msra.mxu0 0
        %1660 = vmatprep.subr.bf16.mxu0 0
        %1661 = vmatpush2.bf16.msra.mxu0 0
        %1662 = vmatprep.subr.bf16.mxu0 0
        %1663 = vmatpush2.bf16.msra.mxu0 0
        %1664 = vmatprep.subr.bf16.mxu0 0
        %1665 = vmatpush2.bf16.msra.mxu0 0
        %1666 = vmatprep.subr.bf16.mxu0 0
        %1667 = vmatpush2.bf16.msra.mxu0 0
        %1668 = vmatprep.mubr.bf16.mxu0 0
        %1669 = vmatmul.mubr.bf16.gmra.mxu0 %v1631
        %v1670 = vpop.f32.mrf.mxu0
        %v1671 = vadd.f32 0.0, %v1670
        %v1672 = vpop.f32.mrf.mxu0
        %v1673 = vpop.f32.mrf.mxu0
        %v1674 = vpop.f32.mrf.mxu0
        %1675 = vdwg.mxu0
        %v1676 = vadd.f32 %v1612, %v1671
        %v1677 = vld [vmem:[%s356] sm:$0xf]
        %s1678 = scalar_lea.vmem %s3, 84
        %v1679 = vld [vmem:[%s1678] sm:$0xf]
        %v1682 = vunpack.c.l.s4 1983009808
        %v1683 = vunpack.c.0.s8 %v1682
        %v1684 = vlaneseq
        %v1685 = vshrl.u32 %v1684, 7
        %v1686 = vsub.s32 %v1683, %v1685
        %v1687 = vrot.slane %v1677, %v1686
        %v1688 = vcombine.high %v1687, %v1687
        %1689 = vrot.lane.b32.xlu0 %v1687, 118
        %v1690 = vpop.permute.xlu0 %1689
        %1691 = vrot.lane.b32.xlu0 %v1688, 118
        %v1692 = vpop.permute.xlu0 %1691
        %v1693 = vsel %vm563, %v1690, %v1692
        %v1695 = vsel %vm385, %v1679, 0
        %v1698 = vand.u32 %v1693, %v392
        %1700 = vmatprep.subr.bf16.mxu0 0
        %1701 = vmatpush1.bf16.msra.mxu0 0
        %1702 = vmatprep.subr.bf16.mxu0 0
        %1703 = vmatpush1.bf16.msra.mxu0 0
        %1704 = vmatprep.subr.bf16.mxu0 0
        %1705 = vmatpush1.bf16.msra.mxu0 0
        %1706 = vmatprep.subr.bf16.mxu0 0
        %1707 = vmatpush1.bf16.msra.mxu0 0
        %1708 = vmatprep.subr.bf16.mxu0 0
        %1709 = vmatpush1.bf16.msra.mxu0 0
        %1710 = vmatprep.subr.bf16.mxu0 0
        %1711 = vmatpush1.bf16.msra.mxu0 0
        %1712 = vmatprep.subr.bf16.mxu0 0
        %1713 = vmatpush1.bf16.msra.mxu0 0
        %1714 = vmatprep.subr.bf16.mxu0 0
        %1715 = vmatpush1.bf16.msra.mxu0 %v1698
        %1716 = vmatprep.subr.bf16.mxu0 0
        %1717 = vmatpush2.bf16.msra.mxu0 0
        %1718 = vmatprep.subr.bf16.mxu0 0
        %1719 = vmatpush2.bf16.msra.mxu0 0
        %1720 = vmatprep.subr.bf16.mxu0 0
        %1721 = vmatpush2.bf16.msra.mxu0 0
        %1722 = vmatprep.subr.bf16.mxu0 0
        %1723 = vmatpush2.bf16.msra.mxu0 0
        %1724 = vmatprep.subr.bf16.mxu0 0
        %1725 = vmatpush2.bf16.msra.mxu0 0
        %1726 = vmatprep.subr.bf16.mxu0 0
        %1727 = vmatpush2.bf16.msra.mxu0 0
        %1728 = vmatprep.subr.bf16.mxu0 0
        %1729 = vmatpush2.bf16.msra.mxu0 0
        %1730 = vmatprep.subr.bf16.mxu0 0
        %1731 = vmatpush2.bf16.msra.mxu0 0
        %1732 = vmatprep.mubr.bf16.mxu0 0
        %1733 = vmatmul.mubr.bf16.gmra.mxu0 %v1695
        %v1734 = vpop.f32.mrf.mxu0
        %v1735 = vadd.f32 0.0, %v1734
        %v1736 = vpop.f32.mrf.mxu0
        %v1737 = vpop.f32.mrf.mxu0
        %v1738 = vpop.f32.mrf.mxu0
        %1739 = vdwg.mxu0
        %v1740 = vadd.f32 %v1676, %v1735
        %v1741 = vld [vmem:[%s356] sm:$0xf]
        %s1742 = scalar_lea.vmem %s3, 88
        %v1743 = vld [vmem:[%s1742] sm:$0xf]
        %v1746 = vunpack.c.l.s4 1983009808
        %v1747 = vunpack.c.0.s8 %v1746
        %v1748 = vlaneseq
        %v1749 = vshrl.u32 %v1748, 7
        %v1750 = vsub.s32 %v1747, %v1749
        %v1751 = vrot.slane %v1741, %v1750
        %v1752 = vcombine.high %v1751, %v1751
        %1753 = vrot.lane.b32.xlu0 %v1751, 117
        %v1754 = vpop.permute.xlu0 %1753
        %1755 = vrot.lane.b32.xlu0 %v1752, 117
        %v1756 = vpop.permute.xlu0 %1755
        %v1757 = vsel %vm628, %v1754, %v1756
        %v1759 = vsel %vm385, %v1743, 0
        %v1762 = vand.u32 %v1757, %v392
        %1764 = vmatprep.subr.bf16.mxu0 0
        %1765 = vmatpush1.bf16.msra.mxu0 0
        %1766 = vmatprep.subr.bf16.mxu0 0
        %1767 = vmatpush1.bf16.msra.mxu0 0
        %1768 = vmatprep.subr.bf16.mxu0 0
        %1769 = vmatpush1.bf16.msra.mxu0 0
        %1770 = vmatprep.subr.bf16.mxu0 0
        %1771 = vmatpush1.bf16.msra.mxu0 0
        %1772 = vmatprep.subr.bf16.mxu0 0
        %1773 = vmatpush1.bf16.msra.mxu0 0
        %1774 = vmatprep.subr.bf16.mxu0 0
        %1775 = vmatpush1.bf16.msra.mxu0 0
        %1776 = vmatprep.subr.bf16.mxu0 0
        %1777 = vmatpush1.bf16.msra.mxu0 0
        %1778 = vmatprep.subr.bf16.mxu0 0
        %1779 = vmatpush1.bf16.msra.mxu0 %v1762
        %1780 = vmatprep.subr.bf16.mxu0 0
        %1781 = vmatpush2.bf16.msra.mxu0 0
        %1782 = vmatprep.subr.bf16.mxu0 0
        %1783 = vmatpush2.bf16.msra.mxu0 0
        %1784 = vmatprep.subr.bf16.mxu0 0
        %1785 = vmatpush2.bf16.msra.mxu0 0
        %1786 = vmatprep.subr.bf16.mxu0 0
        %1787 = vmatpush2.bf16.msra.mxu0 0
        %1788 = vmatprep.subr.bf16.mxu0 0
        %1789 = vmatpush2.bf16.msra.mxu0 0
        %1790 = vmatprep.subr.bf16.mxu0 0
        %1791 = vmatpush2.bf16.msra.mxu0 0
        %1792 = vmatprep.subr.bf16.mxu0 0
        %1793 = vmatpush2.bf16.msra.mxu0 0
        %1794 = vmatprep.subr.bf16.mxu0 0
        %1795 = vmatpush2.bf16.msra.mxu0 0
        %1796 = vmatprep.mubr.bf16.mxu0 0
        %1797 = vmatmul.mubr.bf16.gmra.mxu0 %v1759
        %v1798 = vpop.f32.mrf.mxu0
        %v1799 = vadd.f32 0.0, %v1798
        %v1800 = vpop.f32.mrf.mxu0
        %v1801 = vpop.f32.mrf.mxu0
        %v1802 = vpop.f32.mrf.mxu0
        %1803 = vdwg.mxu0
        %v1804 = vadd.f32 %v1740, %v1799
        %v1805 = vld [vmem:[%s356] sm:$0xf]
        %s1806 = scalar_lea.vmem %s3, 92
        %v1807 = vld [vmem:[%s1806] sm:$0xf]
        %v1810 = vunpack.c.l.s4 1983009808
        %v1811 = vunpack.c.0.s8 %v1810
        %v1812 = vlaneseq
        %v1813 = vshrl.u32 %v1812, 7
        %v1814 = vsub.s32 %v1811, %v1813
        %v1815 = vrot.slane %v1805, %v1814
        %v1816 = vcombine.high %v1815, %v1815
        %1817 = vrot.lane.b32.xlu0 %v1815, 116
        %v1818 = vpop.permute.xlu0 %1817
        %1819 = vrot.lane.b32.xlu0 %v1816, 116
        %v1820 = vpop.permute.xlu0 %1819
        %v1821 = vsel %vm693, %v1818, %v1820
        %v1823 = vsel %vm385, %v1807, 0
        %v1826 = vand.u32 %v1821, %v392
        %1828 = vmatprep.subr.bf16.mxu0 0
        %1829 = vmatpush1.bf16.msra.mxu0 0
        %1830 = vmatprep.subr.bf16.mxu0 0
        %1831 = vmatpush1.bf16.msra.mxu0 0
        %1832 = vmatprep.subr.bf16.mxu0 0
        %1833 = vmatpush1.bf16.msra.mxu0 0
        %1834 = vmatprep.subr.bf16.mxu0 0
        %1835 = vmatpush1.bf16.msra.mxu0 0
        %1836 = vmatprep.subr.bf16.mxu0 0
        %1837 = vmatpush1.bf16.msra.mxu0 0
        %1838 = vmatprep.subr.bf16.mxu0 0
        %1839 = vmatpush1.bf16.msra.mxu0 0
        %1840 = vmatprep.subr.bf16.mxu0 0
        %1841 = vmatpush1.bf16.msra.mxu0 0
        %1842 = vmatprep.subr.bf16.mxu0 0
        %1843 = vmatpush1.bf16.msra.mxu0 %v1826
        %1844 = vmatprep.subr.bf16.mxu0 0
        %1845 = vmatpush2.bf16.msra.mxu0 0
        %1846 = vmatprep.subr.bf16.mxu0 0
        %1847 = vmatpush2.bf16.msra.mxu0 0
        %1848 = vmatprep.subr.bf16.mxu0 0
        %1849 = vmatpush2.bf16.msra.mxu0 0
        %1850 = vmatprep.subr.bf16.mxu0 0
        %1851 = vmatpush2.bf16.msra.mxu0 0
        %1852 = vmatprep.subr.bf16.mxu0 0
        %1853 = vmatpush2.bf16.msra.mxu0 0
        %1854 = vmatprep.subr.bf16.mxu0 0
        %1855 = vmatpush2.bf16.msra.mxu0 0
        %1856 = vmatprep.subr.bf16.mxu0 0
        %1857 = vmatpush2.bf16.msra.mxu0 0
        %1858 = vmatprep.subr.bf16.mxu0 0
        %1859 = vmatpush2.bf16.msra.mxu0 0
        %1860 = vmatprep.mubr.bf16.mxu0 0
        %1861 = vmatmul.mubr.bf16.gmra.mxu0 %v1823
        %v1862 = vpop.f32.mrf.mxu0
        %v1863 = vadd.f32 0.0, %v1862
        %v1864 = vpop.f32.mrf.mxu0
        %v1865 = vpop.f32.mrf.mxu0
        %v1866 = vpop.f32.mrf.mxu0
        %1867 = vdwg.mxu0
        %v1868 = vadd.f32 %v1804, %v1863
        %v1869 = vld [vmem:[%s356] sm:$0xf]
        %s1870 = scalar_lea.vmem %s3, 96
        %v1871 = vld [vmem:[%s1870] sm:$0xf]
        %v1874 = vunpack.c.l.s4 1983009808
        %v1875 = vunpack.c.0.s8 %v1874
        %v1876 = vlaneseq
        %v1877 = vshrl.u32 %v1876, 7
        %v1878 = vsub.s32 %v1875, %v1877
        %v1879 = vrot.slane %v1869, %v1878
        %v1880 = vcombine.high %v1879, %v1879
        %1881 = vrot.lane.b32.xlu0 %v1879, 108
        %v1882 = vpop.permute.xlu0 %1881
        %1883 = vrot.lane.b32.xlu0 %v1880, 108
        %v1884 = vpop.permute.xlu0 %1883
        %v1885 = vsel %vm758, %v1882, %v1884
        %v1887 = vsel %vm385, %v1871, 0
        %v1890 = vand.u32 %v1885, %v392
        %1892 = vmatprep.subr.bf16.mxu0 0
        %1893 = vmatpush1.bf16.msra.mxu0 0
        %1894 = vmatprep.subr.bf16.mxu0 0
        %1895 = vmatpush1.bf16.msra.mxu0 0
        %1896 = vmatprep.subr.bf16.mxu0 0
        %1897 = vmatpush1.bf16.msra.mxu0 0
        %1898 = vmatprep.subr.bf16.mxu0 0
        %1899 = vmatpush1.bf16.msra.mxu0 0
        %1900 = vmatprep.subr.bf16.mxu0 0
        %1901 = vmatpush1.bf16.msra.mxu0 0
        %1902 = vmatprep.subr.bf16.mxu0 0
        %1903 = vmatpush1.bf16.msra.mxu0 0
        %1904 = vmatprep.subr.bf16.mxu0 0
        %1905 = vmatpush1.bf16.msra.mxu0 0
        %1906 = vmatprep.subr.bf16.mxu0 0
        %1907 = vmatpush1.bf16.msra.mxu0 %v1890
        %1908 = vmatprep.subr.bf16.mxu0 0
        %1909 = vmatpush2.bf16.msra.mxu0 0
        %1910 = vmatprep.subr.bf16.mxu0 0
        %1911 = vmatpush2.bf16.msra.mxu0 0
        %1912 = vmatprep.subr.bf16.mxu0 0
        %1913 = vmatpush2.bf16.msra.mxu0 0
        %1914 = vmatprep.subr.bf16.mxu0 0
        %1915 = vmatpush2.bf16.msra.mxu0 0
        %1916 = vmatprep.subr.bf16.mxu0 0
        %1917 = vmatpush2.bf16.msra.mxu0 0
        %1918 = vmatprep.subr.bf16.mxu0 0
        %1919 = vmatpush2.bf16.msra.mxu0 0
        %1920 = vmatprep.subr.bf16.mxu0 0
        %1921 = vmatpush2.bf16.msra.mxu0 0
        %1922 = vmatprep.subr.bf16.mxu0 0
        %1923 = vmatpush2.bf16.msra.mxu0 0
        %1924 = vmatprep.mubr.bf16.mxu0 0
        %1925 = vmatmul.mubr.bf16.gmra.mxu0 %v1887
        %v1926 = vpop.f32.mrf.mxu0
        %v1927 = vadd.f32 0.0, %v1926
        %v1928 = vpop.f32.mrf.mxu0
        %v1929 = vpop.f32.mrf.mxu0
        %v1930 = vpop.f32.mrf.mxu0
        %1931 = vdwg.mxu0
        %v1932 = vadd.f32 %v1868, %v1927
        %v1933 = vld [vmem:[%s356] sm:$0xf]
        %s1934 = scalar_lea.vmem %s3, 100
        %v1935 = vld [vmem:[%s1934] sm:$0xf]
        %v1938 = vunpack.c.l.s4 1983009808
        %v1939 = vunpack.c.0.s8 %v1938
        %v1940 = vlaneseq
        %v1941 = vshrl.u32 %v1940, 7
        %v1942 = vsub.s32 %v1939, %v1941
        %v1943 = vrot.slane %v1933, %v1942
        %v1944 = vcombine.high %v1943, %v1943
        %1945 = vrot.lane.b32.xlu0 %v1943, 107
        %v1946 = vpop.permute.xlu0 %1945
        %1947 = vrot.lane.b32.xlu0 %v1944, 107
        %v1948 = vpop.permute.xlu0 %1947
        %v1949 = vsel %vm823, %v1946, %v1948
        %v1951 = vsel %vm385, %v1935, 0
        %v1954 = vand.u32 %v1949, %v392
        %1956 = vmatprep.subr.bf16.mxu0 0
        %1957 = vmatpush1.bf16.msra.mxu0 0
        %1958 = vmatprep.subr.bf16.mxu0 0
        %1959 = vmatpush1.bf16.msra.mxu0 0
        %1960 = vmatprep.subr.bf16.mxu0 0
        %1961 = vmatpush1.bf16.msra.mxu0 0
        %1962 = vmatprep.subr.bf16.mxu0 0
        %1963 = vmatpush1.bf16.msra.mxu0 0
        %1964 = vmatprep.subr.bf16.mxu0 0
        %1965 = vmatpush1.bf16.msra.mxu0 0
        %1966 = vmatprep.subr.bf16.mxu0 0
        %1967 = vmatpush1.bf16.msra.mxu0 0
        %1968 = vmatprep.subr.bf16.mxu0 0
        %1969 = vmatpush1.bf16.msra.mxu0 0
        %1970 = vmatprep.subr.bf16.mxu0 0
        %1971 = vmatpush1.bf16.msra.mxu0 %v1954
        %1972 = vmatprep.subr.bf16.mxu0 0
        %1973 = vmatpush2.bf16.msra.mxu0 0
        %1974 = vmatprep.subr.bf16.mxu0 0
        %1975 = vmatpush2.bf16.msra.mxu0 0
        %1976 = vmatprep.subr.bf16.mxu0 0
        %1977 = vmatpush2.bf16.msra.mxu0 0
        %1978 = vmatprep.subr.bf16.mxu0 0
        %1979 = vmatpush2.bf16.msra.mxu0 0
        %1980 = vmatprep.subr.bf16.mxu0 0
        %1981 = vmatpush2.bf16.msra.mxu0 0
        %1982 = vmatprep.subr.bf16.mxu0 0
        %1983 = vmatpush2.bf16.msra.mxu0 0
        %1984 = vmatprep.subr.bf16.mxu0 0
        %1985 = vmatpush2.bf16.msra.mxu0 0
        %1986 = vmatprep.subr.bf16.mxu0 0
        %1987 = vmatpush2.bf16.msra.mxu0 0
        %1988 = vmatprep.mubr.bf16.mxu0 0
        %1989 = vmatmul.mubr.bf16.gmra.mxu0 %v1951
        %v1990 = vpop.f32.mrf.mxu0
        %v1991 = vadd.f32 0.0, %v1990
        %v1992 = vpop.f32.mrf.mxu0
        %v1993 = vpop.f32.mrf.mxu0
        %v1994 = vpop.f32.mrf.mxu0
        %1995 = vdwg.mxu0
        %v1996 = vadd.f32 %v1932, %v1991
        %v1997 = vld [vmem:[%s356] sm:$0xf]
        %s1998 = scalar_lea.vmem %s3, 104
        %v1999 = vld [vmem:[%s1998] sm:$0xf]
        %v2002 = vunpack.c.l.s4 1983009808
        %v2003 = vunpack.c.0.s8 %v2002
        %v2004 = vlaneseq
        %v2005 = vshrl.u32 %v2004, 7
        %v2006 = vsub.s32 %v2003, %v2005
        %v2007 = vrot.slane %v1997, %v2006
        %v2008 = vcombine.high %v2007, %v2007
        %2009 = vrot.lane.b32.xlu0 %v2007, 106
        %v2010 = vpop.permute.xlu0 %2009
        %2011 = vrot.lane.b32.xlu0 %v2008, 106
        %v2012 = vpop.permute.xlu0 %2011
        %v2013 = vsel %vm888, %v2010, %v2012
        %v2015 = vsel %vm385, %v1999, 0
        %v2018 = vand.u32 %v2013, %v392
        %2020 = vmatprep.subr.bf16.mxu0 0
        %2021 = vmatpush1.bf16.msra.mxu0 0
        %2022 = vmatprep.subr.bf16.mxu0 0
        %2023 = vmatpush1.bf16.msra.mxu0 0
        %2024 = vmatprep.subr.bf16.mxu0 0
        %2025 = vmatpush1.bf16.msra.mxu0 0
        %2026 = vmatprep.subr.bf16.mxu0 0
        %2027 = vmatpush1.bf16.msra.mxu0 0
        %2028 = vmatprep.subr.bf16.mxu0 0
        %2029 = vmatpush1.bf16.msra.mxu0 0
        %2030 = vmatprep.subr.bf16.mxu0 0
        %2031 = vmatpush1.bf16.msra.mxu0 0
        %2032 = vmatprep.subr.bf16.mxu0 0
        %2033 = vmatpush1.bf16.msra.mxu0 0
        %2034 = vmatprep.subr.bf16.mxu0 0
        %2035 = vmatpush1.bf16.msra.mxu0 %v2018
        %2036 = vmatprep.subr.bf16.mxu0 0
        %2037 = vmatpush2.bf16.msra.mxu0 0
        %2038 = vmatprep.subr.bf16.mxu0 0
        %2039 = vmatpush2.bf16.msra.mxu0 0
        %2040 = vmatprep.subr.bf16.mxu0 0
        %2041 = vmatpush2.bf16.msra.mxu0 0
        %2042 = vmatprep.subr.bf16.mxu0 0
        %2043 = vmatpush2.bf16.msra.mxu0 0
        %2044 = vmatprep.subr.bf16.mxu0 0
        %2045 = vmatpush2.bf16.msra.mxu0 0
        %2046 = vmatprep.subr.bf16.mxu0 0
        %2047 = vmatpush2.bf16.msra.mxu0 0
        %2048 = vmatprep.subr.bf16.mxu0 0
        %2049 = vmatpush2.bf16.msra.mxu0 0
        %2050 = vmatprep.subr.bf16.mxu0 0
        %2051 = vmatpush2.bf16.msra.mxu0 0
        %2052 = vmatprep.mubr.bf16.mxu0 0
        %2053 = vmatmul.mubr.bf16.gmra.mxu0 %v2015
        %v2054 = vpop.f32.mrf.mxu0
        %v2055 = vadd.f32 0.0, %v2054
        %v2056 = vpop.f32.mrf.mxu0
        %v2057 = vpop.f32.mrf.mxu0
        %v2058 = vpop.f32.mrf.mxu0
        %2059 = vdwg.mxu0
        %v2060 = vadd.f32 %v1996, %v2055
        %v2061 = vld [vmem:[%s4] sm:$0xff]
        %2063 = vset.pattern.permute.xlu0 0
        %2064 = vperm.xlu0 %2063, %v2061
        %v2065 = vpop.permute.xlu0 %2064
        %v2067 = vadd.f32 %v2060, %v2065
        %v2068 = vmax.f32 %v2067, 0.0
        %v2069 = vld [vmem:[%s5] sm:$0x1]
        %v2071 = vlaneseq
        %v2072 = vshrl.u32 %v2071, 7
        %v2073 = vsub.s32 0, %v2072
        %v2074 = vrot.slane %v2069, %v2073
        %v2076 = vmul.f32 %v2068, %v2074
        %v2077 = vld [vmem:[#allocation2] sm:$0xff]
        %2078 = vadd.xlane.f32.xlu0 %v2076
        %v2079 = vpop.xlane.xlu0 %2078
        %v2080 = vadd.f32 %v2077, %v2079
        %vm2081 = vcmask 7168
        %2082 = vst.msk [vmem:[#allocation2] sm:$0xff] %vm2081, %v2080
        %p2083 = scmp.eq.s32.totalorder %s25, 7
        // Predicated region
        $region49: #{tpu_custom_call.1} parent=43 // pred_check
          %p2084 = pneg %p2083
        $region50: #{tpu_custom_call.1} parent=43 // pred_check_branch
          %2086 = sbr.rel (%p2084) target = $region52
        $region51: #{tpu_custom_call.1} parent=43 // pred_region
          %v2087 = vld [vmem:[#allocation2] sm:$0xff]
          %v2088 = vmul.f32 %v2087, 0.001953125
          %2090 = vset.pattern.permute.xlu0 0
          %2091 = vperm.xlu0 %2090, %v2088
          %v2092 = vpop.permute.xlu0 %2091
          %2094 = vst [vmem:[%s326] sm:$0xff] %v2092
        $region52: #{tpu_custom_call.1} parent=43 // pred_fallthru
          _
        %s2095 = sand.u32 %s191, 1
        %s2096 = scalar_lea.sflag [#allocation4], %s2095
        %s2097 = sand.u32 %s191, 1
        %s2098 = smul.addr %s2097, 8
        %s2099 = scalar_lea.vmem [#allocation3], %s2098
        // Predicated region
        $region53: #{tpu_custom_call.1} parent=43 // pred_check
          %p2100 = pneg %p201
        $region54: #{tpu_custom_call.1} parent=43 // pred_check_branch
          %2102 = sbr.rel (%p2100) target = $region56
        $region55: #{tpu_custom_call.1} parent=43 // pred_region
          %s2104 = ssub.s32 128, 128
          %2105 = vsyncadd %s2096, %s2104
          %s2106 = smul.addr %s24, 128
          %s2107 = scalar_lea.hbm %s6, %s2106
          %s2109 = sshll.u32 %s2099, 4
          %s2110 = int_to_ptr.vmem [resolvable:$true] %s2109
          %2112 = dma.vmem_to_hbm [thread:$0]  %s2110, 128, %s2107, %s2096
        $region56: #{tpu_custom_call.1} parent=43 // pred_fallthru
          _
      $region44: #{tpu_custom_call.1} parent=5 // pred_fallthru
        _
      %p2113 = scmp.le.s32.totalorder 2, %s15
      // Predicated region
      $region57: #{tpu_custom_call.1} parent=5 // pred_check
        %p2114 = pneg %p2113
      $region58: #{tpu_custom_call.1} parent=5 // pred_check_branch
        %2116 = sbr.rel (%p2114) target = $region60
      $region59: #{tpu_custom_call.1} parent=5 // pred_region
        %s2117 = ssub.s32 %s15, 2
        // Predicated region
        $region61: #{tpu_custom_call.1} parent=59 // pred_check
          %p2118 = pneg %p207
        $region62: #{tpu_custom_call.1} parent=59 // pred_check_branch
          %2120 = sbr.rel (%p2118) target = $region64
        $region63: #{tpu_custom_call.1} parent=59 // pred_region
          %s2121 = sand.u32 %s192, 1
          %s2122 = scalar_lea.sflag [#allocation4], %s2121
          %s2123 = sand.u32 %s192, 1
          %s2124 = smul.addr %s2123, 8
          %s2125 = scalar_lea.vmem [#allocation3], %s2124
          %2126 = dma.done %s2122, 128
        $region64: #{tpu_custom_call.1} parent=59 // pred_fallthru
          _
      $region60: #{tpu_custom_call.1} parent=5 // pred_fallthru
        _
    $region6: #{tpu_custom_call.1} parent=1 // loop_footer
      %s19 = sadd.s32 1, %s15
    $region7: #{tpu_custom_call.1} parent=1 // loop_footer_branch
      %14 = sbr.rel target = $region3
    $region8: #{tpu_custom_call.1} parent=1 // loop_exit
      _
    %2127 = vsyncpa [#allocation4], 1
    %s2128 = scalar_lea.sflag [#allocation4], 1
    %2129 = vsyncpa %s2128, 1

</llo_original>
